<compile_context>
chip_gen: v6e
topology: v6e:2x2x1
jax: 0.10.0
libtpu: 0.0.40
codegen_flags: <defaults>
</compile_context>

<pallas_src>
import functools
import math

import jax
import jax.numpy as jnp
from jax import lax
from jax.experimental import pallas as pl
from jax.experimental.pallas import tpu as pltpu

# ----------------------------- config (BloomConfig, small) -------------------
VOCAB = 128
HIDDEN = 128          # padded to 128 lanes -> lane-dense stores
N_HEAD = 4
HEAD_DIM = HIDDEN // N_HEAD
N_LAYERS = 2
LN_EPS = 1e-5
BATCH = 2
SEQ = 8
APPLY_RESIDUAL_POST_LN = False  # BLOOM default


# ----------------------------- ALiBi slopes (baked python constants) ---------
def get_alibi_slopes(total_num_heads: int):
    closest_power_of_2 = 2 ** math.floor(math.log2(total_num_heads))
    base = 2 ** (-(2 ** (-(math.log2(closest_power_of_2) - 3))))
    slopes = [base ** i for i in range(1, closest_power_of_2 + 1)]
    if closest_power_of_2 != total_num_heads:
        extra_base = 2 ** (-(2 ** (-(math.log2(2 * closest_power_of_2) - 3))))
        num_remaining = min(closest_power_of_2,
                            total_num_heads - closest_power_of_2)
        slopes += [extra_base ** i for i in range(1, 1 + 2 * num_remaining, 2)]
    return [float(s) for s in slopes]


# ----------------------------- fused whole-model kernel ----------------------
def _layernorm(x, g, b, eps):
    mean = jnp.mean(x, axis=-1, keepdims=True)
    var = jnp.mean(jnp.square(x - mean), axis=-1, keepdims=True)
    return (x - mean) * lax.rsqrt(var + eps) * g + b


def bloom_model_kernel(
    # inputs (order must match in_specs / call args)
    h_emb_ref,          # (S, H)  f32   per-batch embedding block
    const_ref,          # (4, H)  f32   emb_ln_g, emb_ln_b, ln_f_g, ln_f_b
    small_ref,          # (8, 4H) f32   per-layer ln1_g/b, ln2_g/b, qkv_b, dense_b, h4h_b, fhh_b
    qkv_w_ref,          # (H, 3H) bf16
    dense_w_ref,        # (H, H)  bf16
    h4h_w_ref,          # (H, 4H) bf16
    fhh_w_ref,          # (4H, H) bf16
    # output: resident hidden state (S, H) for this batch block
    o_ref,
    # scratch
    ctx_scr,            # (S, H)        bf16  assembled per-head contexts (lane-dense)
    bias_scr,           # (N_HEAD, S, S) f32  hoisted ALiBi + causal mask bias
    *, slopes, scale, eps, seq, n_head, head_dim, hidden,
    apply_residual_post_ln,
):
    l = pl.program_id(1)
    last = pl.num_programs(1) - 1

    # --- layer step 0: seed resident state + build layer-invariant bias ------
    @pl.when(l == 0)
    def _():
        x = h_emb_ref[...].astype(jnp.float32)
        o_ref[...] = _layernorm(x, const_ref[0], const_ref[1],
                                eps).astype(o_ref.dtype)
        # ALiBi + causal bias, built once per batch block, reused by all layers.
        # NOTE: slope*(t_k - t_q) differs from HF's slope*key_pos only by a
        # per-row constant, so the softmax output is identical.
        t_q = lax.broadcasted_iota(jnp.int32, (seq, seq), 0)
        t_k = lax.broadcasted_iota(jnp.int32, (seq, seq), 1)
        causal = t_k <= t_q
        delta = (t_k - t_q).astype(jnp.float32)
        neg_big = jnp.float32(-1e30)   # finite mask value (no -inf -> no NaN)
        for hh in range(n_head):
            bias_scr[hh] = jnp.where(causal, slopes[hh] * delta, neg_big)

    h = o_ref[...].astype(jnp.float32)                        # (S, H)

    # --- per-layer small params (single packed DMA) ---------------------------
    small = small_ref[...]                                    # (8, 4H) f32
    ln1_g = small[0, :hidden]
    ln1_b = small[1, :hidden]
    ln2_g = small[2, :hidden]
    ln2_b = small[3, :hidden]
    qkv_b = small[4, :3 * hidden]
    dense_b = small[5, :hidden]
    h4h_b = small[6, :4 * hidden]
    fhh_b = small[7, :hidden]

    # --- input layernorm + fused QKV projection (bf16 MXU, f32 accum) --------
    ln1 = _layernorm(h, ln1_g, ln1_b, eps)
    residual = ln1 if apply_residual_post_ln else h

    qkv = jnp.dot(ln1.astype(jnp.bfloat16), qkv_w_ref[...],
                  preferred_element_type=jnp.float32) + qkv_b  # (S, 3H) f32

    # --- attention: per-head scores/softmax, ctx assembled lane-dense --------
    for hh in range(n_head):
        lo = hh * head_dim
        q_h = qkv[:, lo:lo + head_dim].astype(jnp.bfloat16)
        k_h = qkv[:, hidden + lo:hidden + lo + head_dim].astype(jnp.bfloat16)
        v_h = qkv[:, 2 * hidden + lo:2 * hidden + lo + head_dim].astype(
            jnp.bfloat16)

        s = lax.dot_general(q_h, k_h, (((1,), (1,)), ((), ())),
                            preferred_element_type=jnp.float32)
        s = s * scale + bias_scr[hh]                          # hoisted bias/mask
        m = jnp.max(s, axis=-1, keepdims=True)
        p = jnp.exp(s - m)
        p = p * pl.reciprocal(jnp.sum(p, axis=-1, keepdims=True), approx=True)
        ctx = jnp.dot(p.astype(jnp.bfloat16), v_h,
                      preferred_element_type=jnp.float32)     # (S, HD)
        ctx_scr[:, lo:lo + head_dim] = ctx.astype(jnp.bfloat16)

    # single K=H dense projection (replaces N_HEAD K=HEAD_DIM matmuls)
    attn_dense = jnp.dot(ctx_scr[...], dense_w_ref[...],
                         preferred_element_type=jnp.float32)
    attn_out = attn_dense + dense_b + residual                # bias + residual

    # --- post-attention layernorm + MLP (bias + gelu + residual fused) -------
    ln2 = _layernorm(attn_out, ln2_g, ln2_b, eps)
    residual2 = ln2 if apply_residual_post_ln else attn_out

    y = jnp.dot(ln2.astype(jnp.bfloat16), h4h_w_ref[...],
                preferred_element_type=jnp.float32) + h4h_b
    # tanh-approximate GELU (goes to EUP); tiny deviation from BLOOM's erf gelu
    y = 0.5 * y * (1.0 + jnp.tanh(0.7978845608028654 *
                                  (y + 0.044715 * y * y * y)))
    y = jnp.dot(y.astype(jnp.bfloat16), fhh_w_ref[...],
                preferred_element_type=jnp.float32) + fhh_b
    y = y + residual2

    # --- fold ln_f into the last layer step; single lane-dense store ---------
    ln_f = _layernorm(y, const_ref[2], const_ref[3], eps)
    y_final = jnp.where(l == last, ln_f, y)
    o_ref[...] = y_final.astype(o_ref.dtype)


# ----------------------------- wrapper ----------------------------------------
def bloom_forward(params, input_ids):
    B, S = input_ids.shape
    H, L = HIDDEN, N_LAYERS

    # Embedding gather stays in plain JAX (glue).
    h_emb = params["word_embeddings"][input_ids]              # (B, S, H)

    per_batch = lambda b, l: (b, 0, 0)
    per_layer = lambda b, l: (l, 0, 0)
    const2 = lambda b, l: (0, 0)

    lyr = params["layers"]
    kernel = functools.partial(
        bloom_model_kernel,
        slopes=tuple(get_alibi_slopes(N_HEAD)),
        scale=HEAD_DIM ** (-0.5),
        eps=LN_EPS, seq=S,
        n_head=N_HEAD, head_dim=HEAD_DIM, hidden=H,
        apply_residual_post_ln=APPLY_RESIDUAL_POST_LN,
    )

    out = pl.pallas_call(
        kernel,
        out_shape=jax.ShapeDtypeStruct((B, S, H), jnp.float32),
        grid=(B, L),
        in_specs=[
            pl.BlockSpec((None, S, H), per_batch),            # h_emb (per batch)
            pl.BlockSpec((4, H), const2),                     # emb_ln / ln_f params
            pl.BlockSpec((None, 8, 4 * H), per_layer),        # packed small per-layer params
            pl.BlockSpec((None, H, 3 * H), per_layer),        # qkv_w  (bf16)
            pl.BlockSpec((None, H, H), per_layer),            # dense_w (bf16)
            pl.BlockSpec((None, H, 4 * H), per_layer),        # h4h_w  (bf16)
            pl.BlockSpec((None, 4 * H, H), per_layer),        # fhh_w  (bf16)
        ],
        out_specs=pl.BlockSpec((None, S, H), per_batch),      # resident hidden state
        scratch_shapes=[
            pltpu.VMEM((S, H), jnp.bfloat16),                 # lane-dense ctx buffer
            pltpu.VMEM((N_HEAD, S, S), jnp.float32),          # hoisted ALiBi/causal bias
        ],
        compiler_params=pltpu.CompilerParams(
            dimension_semantics=("parallel", "arbitrary"),    # batch || layers seq
            vmem_limit_bytes=64 << 20),
    )(
        h_emb,
        params["const_ln"],
        lyr["small"],
        lyr["qkv_w"], lyr["dense_w"], lyr["h4h_w"], lyr["fhh_w"],
    )
    return out


# ----------------------------- parameter init --------------------------------
def init_params(key):
    def normal(k, shape, scale=0.02):
        return scale * jax.random.normal(k, shape, dtype=jnp.float32)

    ks = jax.random.split(key, 9)
    L, H = N_LAYERS, HIDDEN
    W = 4 * H

    def pad_row(x):  # (L, w) -> (L, 1, W)  zero-padded to max width
        return jnp.pad(x, ((0, 0), (0, W - x.shape[-1])))[:, None, :]

    # packed small per-layer params: rows =
    #   0 ln1_g, 1 ln1_b, 2 ln2_g, 3 ln2_b, 4 qkv_b, 5 dense_b, 6 h4h_b, 7 fhh_b
    small = jnp.concatenate([
        pad_row(jnp.ones((L, H), jnp.float32)),
        pad_row(jnp.zeros((L, H), jnp.float32)),
        pad_row(jnp.ones((L, H), jnp.float32)),
        pad_row(jnp.zeros((L, H), jnp.float32)),
        pad_row(normal(ks[2], (L, 3 * H))),
        pad_row(normal(ks[4], (L, H))),
        pad_row(normal(ks[6], (L, 4 * H))),
        pad_row(normal(ks[8], (L, H))),
    ], axis=1)                                                # (L, 8, 4H)

    # rows: 0 emb_ln_g, 1 emb_ln_b, 2 ln_f_g, 3 ln_f_b
    const_ln = jnp.concatenate([
        jnp.ones((1, H), jnp.float32),
        jnp.zeros((1, H), jnp.float32),
        jnp.ones((1, H), jnp.float32),
        jnp.zeros((1, H), jnp.float32),
    ], axis=0)                                                # (4, H)

    params = {
        "word_embeddings": normal(ks[0], (VOCAB, H)),
        "const_ln": const_ln,
        "layers": {
            "small": small,
            # weights stored (in, out) == torch (out, in) transposed, bf16 MXU operands
            "qkv_w": normal(ks[1], (L, H, 3 * H)).astype(jnp.bfloat16),
            "dense_w": normal(ks[3], (L, H, H)).astype(jnp.bfloat16),
            "h4h_w": normal(ks[5], (L, H, 4 * H)).astype(jnp.bfloat16),
            "fhh_w": normal(ks[7], (L, 4 * H, H)).astype(jnp.bfloat16),
        },
    }
    return params


# ----------------------------- main -------------------------------------------
if __name__ == "__main__":
    key = jax.random.PRNGKey(0)
    k_params, k_ids = jax.random.split(key)
    params = init_params(k_params)
    input_ids = jax.random.randint(k_ids, (BATCH, SEQ), 0, VOCAB, dtype=jnp.int32)

    out = jax.jit(bloom_forward)(params, input_ids)
    out = jax.block_until_ready(out)
    assert out.shape == (BATCH, SEQ, HIDDEN)
    assert bool(jnp.all(jnp.isfinite(out)))
    print("KERNEL_OK")
</pallas_src>

<mosaic_0001>
module attributes {stable_mosaic.version = 11 : i64} {
  func.func @bloom_model_kernel(%arg0: i32, %arg1: i32, %arg2: memref<1x8x128xf32, #tpu.memory_space<vmem>>, %arg3: memref<4x128xf32, #tpu.memory_space<vmem>>, %arg4: memref<1x8x512xf32, #tpu.memory_space<vmem>>, %arg5: memref<1x128x384xbf16, #tpu.memory_space<vmem>>, %arg6: memref<1x128x128xbf16, #tpu.memory_space<vmem>>, %arg7: memref<1x128x512xbf16, #tpu.memory_space<vmem>>, %arg8: memref<1x512x128xbf16, #tpu.memory_space<vmem>>, %arg9: memref<1x8x128xf32, #tpu.memory_space<vmem>>, %arg10: memref<8x128xbf16, #tpu.memory_space<vmem>>, %arg11: memref<4x8x8xf32, #tpu.memory_space<vmem>>) attributes {dimension_semantics = [#tpu.dimension_semantics<parallel>, #tpu.dimension_semantics<arbitrary>], iteration_bounds = array<i64: 2, 2>, scalar_prefetch = 0 : i64, scratch_operands = 2 : i64, tpu.core_type = #tpu.core_type<tc>, window_params = [{transform_indices = @transform_0, window_bounds = array<i64: 1, 8, 128>}, {pipeline_mode = #tpu.pipeline_mode<synchronous>, transform_indices = @transform_1, window_bounds = array<i64: 4, 128>}, {transform_indices = @transform_2, window_bounds = array<i64: 1, 8, 512>}, {transform_indices = @transform_3, window_bounds = array<i64: 1, 128, 384>}, {transform_indices = @transform_4, window_bounds = array<i64: 1, 128, 128>}, {transform_indices = @transform_5, window_bounds = array<i64: 1, 128, 512>}, {transform_indices = @transform_6, window_bounds = array<i64: 1, 512, 128>}, {transform_indices = @transform_7, window_bounds = array<i64: 1, 8, 128>}]} {
    %c0_i32 = arith.constant 0 : i32
    %0 = arith.cmpi eq, %arg1, %c0_i32 : i32
    %1 = arith.extui %0 : i1 to i32
    %c0_i32_0 = arith.constant 0 : i32
    %2 = arith.cmpi ne, %1, %c0_i32_0 : i32
    scf.if %2 {
      %c0_83 = arith.constant 0 : index
      %c0_84 = arith.constant 0 : index
      %c0_85 = arith.constant 0 : index
      %251 = vector.load %arg2[%c0_83, %c0_84, %c0_85] : memref<1x8x128xf32, #tpu.memory_space<vmem>>, vector<1x8x128xf32>
      %252 = vector.shape_cast %251 : vector<1x8x128xf32> to vector<8x128xf32>
      %c0_86 = arith.constant 0 : index
      %c0_87 = arith.constant 0 : index
      %253 = vector.load %arg3[%c0_86, %c0_87] : memref<4x128xf32, #tpu.memory_space<vmem>>, vector<1x128xf32>
      %254 = vector.shape_cast %253 : vector<1x128xf32> to vector<128xf32>
      %c1_88 = arith.constant 1 : index
      %c0_89 = arith.constant 0 : index
      %255 = vector.load %arg3[%c1_88, %c0_89] : memref<4x128xf32, #tpu.memory_space<vmem>>, vector<1x128xf32>
      %256 = vector.shape_cast %255 : vector<1x128xf32> to vector<128xf32>
      %cst_90 = arith.constant dense<0.000000e+00> : vector<8xf32>
      %257 = vector.multi_reduction <add>, %252, %cst_90 [1] : vector<8x128xf32> to vector<8xf32>
      %258 = vector.shape_cast %257 : vector<8xf32> to vector<8x1xf32>
      %cst_91 = arith.constant 1.280000e+02 : f32
      %259 = vector.broadcast %cst_91 : f32 to vector<8x1xf32>
      %260 = arith.divf %258, %259 : vector<8x1xf32>
      %261 = vector.broadcast %260 : vector<8x1xf32> to vector<8x128xf32>
      %262 = arith.subf %252, %261 : vector<8x128xf32>
      %263 = arith.mulf %262, %262 : vector<8x128xf32>
      %cst_92 = arith.constant dense<0.000000e+00> : vector<8xf32>
      %264 = vector.multi_reduction <add>, %263, %cst_92 [1] : vector<8x128xf32> to vector<8xf32>
      %265 = vector.shape_cast %264 : vector<8xf32> to vector<8x1xf32>
      %cst_93 = arith.constant 1.280000e+02 : f32
      %266 = vector.broadcast %cst_93 : f32 to vector<8x1xf32>
      %267 = arith.divf %265, %266 : vector<8x1xf32>
      %268 = vector.broadcast %260 : vector<8x1xf32> to vector<8x128xf32>
      %269 = arith.subf %252, %268 : vector<8x128xf32>
      %cst_94 = arith.constant 9.99999974E-6 : f32
      %270 = vector.broadcast %cst_94 : f32 to vector<8x1xf32>
      %271 = arith.addf %267, %270 : vector<8x1xf32>
      %272 = math.rsqrt %271 : vector<8x1xf32>
      %273 = vector.broadcast %272 : vector<8x1xf32> to vector<8x128xf32>
      %274 = arith.mulf %269, %273 : vector<8x128xf32>
      %275 = vector.shape_cast %254 : vector<128xf32> to vector<1x128xf32>
      %276 = vector.broadcast %275 : vector<1x128xf32> to vector<8x128xf32>
      %277 = arith.mulf %274, %276 : vector<8x128xf32>
      %278 = vector.shape_cast %256 : vector<128xf32> to vector<1x128xf32>
      %279 = vector.broadcast %278 : vector<1x128xf32> to vector<8x128xf32>
      %280 = arith.addf %277, %279 : vector<8x128xf32>
      %c0_95 = arith.constant 0 : index
      %c0_96 = arith.constant 0 : index
      %c0_97 = arith.constant 0 : index
      %281 = vector.load %arg9[%c0_95, %c0_96, %c0_97] : memref<1x8x128xf32, #tpu.memory_space<vmem>>, vector<1x8x128xf32>
      %282 = vector.shape_cast %281 : vector<1x8x128xf32> to vector<8x128xf32>
      %283 = vector.shape_cast %280 : vector<8x128xf32> to vector<1x8x128xf32>
      tpu.vector_store %arg9[%c0_95, %c0_96, %c0_97], %283 {strides = array<i32>} : memref<1x8x128xf32, #tpu.memory_space<vmem>>, vector<1x8x128xf32>,
      %284 = tpu.iota {dimensions = array<i32: 0>} : vector<8x8xi32>
      %285 = tpu.iota {dimensions = array<i32: 1>} : vector<8x8xi32>
      %286 = arith.cmpi sle, %285, %284 : vector<8x8xi32>
      %287 = arith.subi %285, %284 : vector<8x8xi32>
      %288 = arith.sitofp %287 : vector<8x8xi32> to vector<8x8xf32>
      %cst_98 = arith.constant 2.500000e-01 : f32
      %289 = vector.broadcast %cst_98 : f32 to vector<8x8xf32>
      %290 = arith.mulf %289, %288 : vector<8x8xf32>
      %cst_99 = arith.constant -1.000000e+30 : f32
      %291 = vector.broadcast %cst_99 : f32 to vector<8x8xf32>
      %292 = arith.select %286, %290, %291 : vector<8x8xi1>, vector<8x8xf32>
      %c0_100 = arith.constant 0 : index
      %c0_101 = arith.constant 0 : index
      %c0_102 = arith.constant 0 : index
      %293 = vector.load %arg11[%c0_100, %c0_101, %c0_102] : memref<4x8x8xf32, #tpu.memory_space<vmem>>, vector<1x8x8xf32>
      %294 = vector.shape_cast %293 : vector<1x8x8xf32> to vector<8x8xf32>
      %295 = vector.shape_cast %292 : vector<8x8xf32> to vector<1x8x8xf32>
      tpu.vector_store %arg11[%c0_100, %c0_101, %c0_102], %295 {strides = array<i32>} : memref<4x8x8xf32, #tpu.memory_space<vmem>>, vector<1x8x8xf32>,
      %cst_103 = arith.constant 6.250000e-02 : f32
      %296 = vector.broadcast %cst_103 : f32 to vector<8x8xf32>
      %297 = arith.mulf %296, %288 : vector<8x8xf32>
      %cst_104 = arith.constant -1.000000e+30 : f32
      %298 = vector.broadcast %cst_104 : f32 to vector<8x8xf32>
      %299 = arith.select %286, %297, %298 : vector<8x8xi1>, vector<8x8xf32>
      %c1_105 = arith.constant 1 : index
      %c0_106 = arith.constant 0 : index
      %c0_107 = arith.constant 0 : index
      %300 = vector.load %arg11[%c1_105, %c0_106, %c0_107] : memref<4x8x8xf32, #tpu.memory_space<vmem>>, vector<1x8x8xf32>
      %301 = vector.shape_cast %300 : vector<1x8x8xf32> to vector<8x8xf32>
      %302 = vector.shape_cast %299 : vector<8x8xf32> to vector<1x8x8xf32>
      tpu.vector_store %arg11[%c1_105, %c0_106, %c0_107], %302 {strides = array<i32>} : memref<4x8x8xf32, #tpu.memory_space<vmem>>, vector<1x8x8xf32>,
      %cst_108 = arith.constant 1.562500e-02 : f32
      %303 = vector.broadcast %cst_108 : f32 to vector<8x8xf32>
      %304 = arith.mulf %303, %288 : vector<8x8xf32>
      %cst_109 = arith.constant -1.000000e+30 : f32
      %305 = vector.broadcast %cst_109 : f32 to vector<8x8xf32>
      %306 = arith.select %286, %304, %305 : vector<8x8xi1>, vector<8x8xf32>
      %c2_110 = arith.constant 2 : index
      %c0_111 = arith.constant 0 : index
      %c0_112 = arith.constant 0 : index
      %307 = vector.load %arg11[%c2_110, %c0_111, %c0_112] : memref<4x8x8xf32, #tpu.memory_space<vmem>>, vector<1x8x8xf32>
      %308 = vector.shape_cast %307 : vector<1x8x8xf32> to vector<8x8xf32>
      %309 = vector.shape_cast %306 : vector<8x8xf32> to vector<1x8x8xf32>
      tpu.vector_store %arg11[%c2_110, %c0_111, %c0_112], %309 {strides = array<i32>} : memref<4x8x8xf32, #tpu.memory_space<vmem>>, vector<1x8x8xf32>,
      %cst_113 = arith.constant 3.906250e-03 : f32
      %310 = vector.broadcast %cst_113 : f32 to vector<8x8xf32>
      %311 = arith.mulf %310, %288 : vector<8x8xf32>
      %cst_114 = arith.constant -1.000000e+30 : f32
      %312 = vector.broadcast %cst_114 : f32 to vector<8x8xf32>
      %313 = arith.select %286, %311, %312 : vector<8x8xi1>, vector<8x8xf32>
      %c3_115 = arith.constant 3 : index
      %c0_116 = arith.constant 0 : index
      %c0_117 = arith.constant 0 : index
      %314 = vector.load %arg11[%c3_115, %c0_116, %c0_117] : memref<4x8x8xf32, #tpu.memory_space<vmem>>, vector<1x8x8xf32>
      %315 = vector.shape_cast %314 : vector<1x8x8xf32> to vector<8x8xf32>
      %316 = vector.shape_cast %313 : vector<8x8xf32> to vector<1x8x8xf32>
      tpu.vector_store %arg11[%c3_115, %c0_116, %c0_117], %316 {strides = array<i32>} : memref<4x8x8xf32, #tpu.memory_space<vmem>>, vector<1x8x8xf32>,
    } else {
    }
    %c0 = arith.constant 0 : index
    %c0_1 = arith.constant 0 : index
    %c0_2 = arith.constant 0 : index
    %3 = vector.load %arg9[%c0, %c0_1, %c0_2] : memref<1x8x128xf32, #tpu.memory_space<vmem>>, vector<1x8x128xf32>
    %4 = vector.shape_cast %3 : vector<1x8x128xf32> to vector<8x128xf32>
    %c0_3 = arith.constant 0 : index
    %c0_4 = arith.constant 0 : index
    %c0_5 = arith.constant 0 : index
    %5 = vector.load %arg4[%c0_3, %c0_4, %c0_5] : memref<1x8x512xf32, #tpu.memory_space<vmem>>, vector<1x8x512xf32>
    %6 = vector.shape_cast %5 : vector<1x8x512xf32> to vector<8x512xf32>
    %7 = vector.extract_strided_slice %6 {offsets = [0, 0], sizes = [1, 128], strides = [1, 1]} : vector<8x512xf32> to vector<1x128xf32>
    %8 = vector.shape_cast %7 : vector<1x128xf32> to vector<128xf32>
    %9 = vector.extract_strided_slice %6 {offsets = [1, 0], sizes = [1, 128], strides = [1, 1]} : vector<8x512xf32> to vector<1x128xf32>
    %10 = vector.shape_cast %9 : vector<1x128xf32> to vector<128xf32>
    %11 = vector.extract_strided_slice %6 {offsets = [2, 0], sizes = [1, 128], strides = [1, 1]} : vector<8x512xf32> to vector<1x128xf32>
    %12 = vector.shape_cast %11 : vector<1x128xf32> to vector<128xf32>
    %13 = vector.extract_strided_slice %6 {offsets = [3, 0], sizes = [1, 128], strides = [1, 1]} : vector<8x512xf32> to vector<1x128xf32>
    %14 = vector.shape_cast %13 : vector<1x128xf32> to vector<128xf32>
    %15 = vector.extract_strided_slice %6 {offsets = [4, 0], sizes = [1, 384], strides = [1, 1]} : vector<8x512xf32> to vector<1x384xf32>
    %16 = vector.shape_cast %15 : vector<1x384xf32> to vector<384xf32>
    %17 = vector.extract_strided_slice %6 {offsets = [5, 0], sizes = [1, 128], strides = [1, 1]} : vector<8x512xf32> to vector<1x128xf32>
    %18 = vector.shape_cast %17 : vector<1x128xf32> to vector<128xf32>
    %19 = vector.extract_strided_slice %6 {offsets = [6, 0], sizes = [1, 512], strides = [1, 1]} : vector<8x512xf32> to vector<1x512xf32>
    %20 = vector.shape_cast %19 : vector<1x512xf32> to vector<512xf32>
    %21 = vector.extract_strided_slice %6 {offsets = [7, 0], sizes = [1, 128], strides = [1, 1]} : vector<8x512xf32> to vector<1x128xf32>
    %22 = vector.shape_cast %21 : vector<1x128xf32> to vector<128xf32>
    %cst = arith.constant dense<0.000000e+00> : vector<8xf32>
    %23 = vector.multi_reduction <add>, %4, %cst [1] : vector<8x128xf32> to vector<8xf32>
    %24 = vector.shape_cast %23 : vector<8xf32> to vector<8x1xf32>
    %cst_6 = arith.constant 1.280000e+02 : f32
    %25 = vector.broadcast %cst_6 : f32 to vector<8x1xf32>
    %26 = arith.divf %24, %25 : vector<8x1xf32>
    %27 = vector.broadcast %26 : vector<8x1xf32> to vector<8x128xf32>
    %28 = arith.subf %4, %27 : vector<8x128xf32>
    %29 = arith.mulf %28, %28 : vector<8x128xf32>
    %cst_7 = arith.constant dense<0.000000e+00> : vector<8xf32>
    %30 = vector.multi_reduction <add>, %29, %cst_7 [1] : vector<8x128xf32> to vector<8xf32>
    %31 = vector.shape_cast %30 : vector<8xf32> to vector<8x1xf32>
    %cst_8 = arith.constant 1.280000e+02 : f32
    %32 = vector.broadcast %cst_8 : f32 to vector<8x1xf32>
    %33 = arith.divf %31, %32 : vector<8x1xf32>
    %34 = vector.broadcast %26 : vector<8x1xf32> to vector<8x128xf32>
    %35 = arith.subf %4, %34 : vector<8x128xf32>
    %cst_9 = arith.constant 9.99999974E-6 : f32
    %36 = vector.broadcast %cst_9 : f32 to vector<8x1xf32>
    %37 = arith.addf %33, %36 : vector<8x1xf32>
    %38 = math.rsqrt %37 : vector<8x1xf32>
    %39 = vector.broadcast %38 : vector<8x1xf32> to vector<8x128xf32>
    %40 = arith.mulf %35, %39 : vector<8x128xf32>
    %41 = vector.shape_cast %8 : vector<128xf32> to vector<1x128xf32>
    %42 = vector.broadcast %41 : vector<1x128xf32> to vector<8x128xf32>
    %43 = arith.mulf %40, %42 : vector<8x128xf32>
    %44 = vector.shape_cast %10 : vector<128xf32> to vector<1x128xf32>
    %45 = vector.broadcast %44 : vector<1x128xf32> to vector<8x128xf32>
    %46 = arith.addf %43, %45 : vector<8x128xf32>
    %47 = arith.truncf %46 : vector<8x128xf32> to vector<8x128xbf16>
    %c0_10 = arith.constant 0 : index
    %c0_11 = arith.constant 0 : index
    %c0_12 = arith.constant 0 : index
    %48 = vector.load %arg5[%c0_10, %c0_11, %c0_12] : memref<1x128x384xbf16, #tpu.memory_space<vmem>>, vector<1x128x384xbf16>
    %49 = vector.shape_cast %48 : vector<1x128x384xbf16> to vector<128x384xbf16>
    %cst_13 = arith.constant dense<0.000000e+00> : vector<8x384xf32>
    %50 = tpu.matmul %47, %49, %cst_13 {dimension_numbers = #tpu.dot_dimension_numbers<[1], [0], [0], [1], [0, 0, 1, 1], [], []>} : vector<8x128xbf16>, vector<128x384xbf16>, vector<8x384xf32> -> vector<8x384xf32>
    %51 = vector.shape_cast %16 : vector<384xf32> to vector<1x384xf32>
    %52 = vector.broadcast %51 : vector<1x384xf32> to vector<8x384xf32>
    %53 = arith.addf %50, %52 : vector<8x384xf32>
    %54 = vector.extract_strided_slice %53 {offsets = [0, 0], sizes = [8, 32], strides = [1, 1]} : vector<8x384xf32> to vector<8x32xf32>
    %55 = arith.truncf %54 : vector<8x32xf32> to vector<8x32xbf16>
    %56 = vector.extract_strided_slice %53 {offsets = [0, 128], sizes = [8, 32], strides = [1, 1]} : vector<8x384xf32> to vector<8x32xf32>
    %57 = arith.truncf %56 : vector<8x32xf32> to vector<8x32xbf16>
    %58 = vector.extract_strided_slice %53 {offsets = [0, 256], sizes = [8, 32], strides = [1, 1]} : vector<8x384xf32> to vector<8x32xf32>
    %59 = arith.truncf %58 : vector<8x32xf32> to vector<8x32xbf16>
    %cst_14 = arith.constant dense<0.000000e+00> : vector<8x8xf32>
    %60 = tpu.matmul %55, %57, %cst_14 {dimension_numbers = #tpu.dot_dimension_numbers<[1], [1], [0], [0], [0, 0, 1, 0], [], []>} : vector<8x32xbf16>, vector<8x32xbf16>, vector<8x8xf32> -> vector<8x8xf32>
    %cst_15 = arith.constant 0.176776692 : f32
    %61 = vector.broadcast %cst_15 : f32 to vector<8x8xf32>
    %62 = arith.mulf %60, %61 : vector<8x8xf32>
    %c0_16 = arith.constant 0 : index
    %c0_17 = arith.constant 0 : index
    %c0_18 = arith.constant 0 : index
    %63 = vector.load %arg11[%c0_16, %c0_17, %c0_18] : memref<4x8x8xf32, #tpu.memory_space<vmem>>, vector<1x8x8xf32>
    %64 = vector.shape_cast %63 : vector<1x8x8xf32> to vector<8x8xf32>
    %65 = arith.addf %62, %64 : vector<8x8xf32>
    %cst_19 = arith.constant dense<0xFF800000> : vector<8xf32>
    %66 = vector.multi_reduction <maximumf>, %65, %cst_19 [1] : vector<8x8xf32> to vector<8xf32>
    %67 = vector.shape_cast %66 : vector<8xf32> to vector<8x1xf32>
    %68 = vector.broadcast %67 : vector<8x1xf32> to vector<8x8xf32>
    %69 = arith.subf %65, %68 : vector<8x8xf32>
    %70 = math.exp %69 : vector<8x8xf32>
    %cst_20 = arith.constant dense<0.000000e+00> : vector<8xf32>
    %71 = vector.multi_reduction <add>, %70, %cst_20 [1] : vector<8x8xf32> to vector<8xf32>
    %72 = vector.shape_cast %71 : vector<8xf32> to vector<8x1xf32>
    %73 = tpu.reciprocal %72 {approx = true} : vector<8x1xf32> -> vector<8x1xf32>
    %74 = vector.broadcast %73 : vector<8x1xf32> to vector<8x8xf32>
    %75 = arith.mulf %70, %74 : vector<8x8xf32>
    %76 = arith.truncf %75 : vector<8x8xf32> to vector<8x8xbf16>
    %cst_21 = arith.constant dense<0.000000e+00> : vector<8x32xf32>
    %77 = tpu.matmul %76, %59, %cst_21 {dimension_numbers = #tpu.dot_dimension_numbers<[1], [0], [0], [1], [0, 0, 1, 1], [], []>} : vector<8x8xbf16>, vector<8x32xbf16>, vector<8x32xf32> -> vector<8x32xf32>
    %78 = arith.truncf %77 : vector<8x32xf32> to vector<8x32xbf16>
    %c0_22 = arith.constant 0 : index
    %c0_23 = arith.constant 0 : index
    %79 = vector.load %arg10[%c0_22, %c0_23] : memref<8x128xbf16, #tpu.memory_space<vmem>>, vector<8x32xbf16>
    tpu.vector_store %arg10[%c0_22, %c0_23], %78 {strides = array<i32>} : memref<8x128xbf16, #tpu.memory_space<vmem>>, vector<8x32xbf16>,
    %80 = vector.extract_strided_slice %53 {offsets = [0, 32], sizes = [8, 32], strides = [1, 1]} : vector<8x384xf32> to vector<8x32xf32>
    %81 = arith.truncf %80 : vector<8x32xf32> to vector<8x32xbf16>
    %82 = vector.extract_strided_slice %53 {offsets = [0, 160], sizes = [8, 32], strides = [1, 1]} : vector<8x384xf32> to vector<8x32xf32>
    %83 = arith.truncf %82 : vector<8x32xf32> to vector<8x32xbf16>
    %84 = vector.extract_strided_slice %53 {offsets = [0, 288], sizes = [8, 32], strides = [1, 1]} : vector<8x384xf32> to vector<8x32xf32>
    %85 = arith.truncf %84 : vector<8x32xf32> to vector<8x32xbf16>
    %cst_24 = arith.constant dense<0.000000e+00> : vector<8x8xf32>
    %86 = tpu.matmul %81, %83, %cst_24 {dimension_numbers = #tpu.dot_dimension_numbers<[1], [1], [0], [0], [0, 0, 1, 0], [], []>} : vector<8x32xbf16>, vector<8x32xbf16>, vector<8x8xf32> -> vector<8x8xf32>
    %cst_25 = arith.constant 0.176776692 : f32
    %87 = vector.broadcast %cst_25 : f32 to vector<8x8xf32>
    %88 = arith.mulf %86, %87 : vector<8x8xf32>
    %c1 = arith.constant 1 : index
    %c0_26 = arith.constant 0 : index
    %c0_27 = arith.constant 0 : index
    %89 = vector.load %arg11[%c1, %c0_26, %c0_27] : memref<4x8x8xf32, #tpu.memory_space<vmem>>, vector<1x8x8xf32>
    %90 = vector.shape_cast %89 : vector<1x8x8xf32> to vector<8x8xf32>
    %91 = arith.addf %88, %90 : vector<8x8xf32>
    %cst_28 = arith.constant dense<0xFF800000> : vector<8xf32>
    %92 = vector.multi_reduction <maximumf>, %91, %cst_28 [1] : vector<8x8xf32> to vector<8xf32>
    %93 = vector.shape_cast %92 : vector<8xf32> to vector<8x1xf32>
    %94 = vector.broadcast %93 : vector<8x1xf32> to vector<8x8xf32>
    %95 = arith.subf %91, %94 : vector<8x8xf32>
    %96 = math.exp %95 : vector<8x8xf32>
    %cst_29 = arith.constant dense<0.000000e+00> : vector<8xf32>
    %97 = vector.multi_reduction <add>, %96, %cst_29 [1] : vector<8x8xf32> to vector<8xf32>
    %98 = vector.shape_cast %97 : vector<8xf32> to vector<8x1xf32>
    %99 = tpu.reciprocal %98 {approx = true} : vector<8x1xf32> -> vector<8x1xf32>
    %100 = vector.broadcast %99 : vector<8x1xf32> to vector<8x8xf32>
    %101 = arith.mulf %96, %100 : vector<8x8xf32>
    %102 = arith.truncf %101 : vector<8x8xf32> to vector<8x8xbf16>
    %cst_30 = arith.constant dense<0.000000e+00> : vector<8x32xf32>
    %103 = tpu.matmul %102, %85, %cst_30 {dimension_numbers = #tpu.dot_dimension_numbers<[1], [0], [0], [1], [0, 0, 1, 1], [], []>} : vector<8x8xbf16>, vector<8x32xbf16>, vector<8x32xf32> -> vector<8x32xf32>
    %104 = arith.truncf %103 : vector<8x32xf32> to vector<8x32xbf16>
    %c0_31 = arith.constant 0 : index
    %c32 = arith.constant 32 : index
    %105 = vector.load %arg10[%c0_31, %c32] : memref<8x128xbf16, #tpu.memory_space<vmem>>, vector<8x32xbf16>
    tpu.vector_store %arg10[%c0_31, %c32], %104 {strides = array<i32>} : memref<8x128xbf16, #tpu.memory_space<vmem>>, vector<8x32xbf16>,
    %106 = vector.extract_strided_slice %53 {offsets = [0, 64], sizes = [8, 32], strides = [1, 1]} : vector<8x384xf32> to vector<8x32xf32>
    %107 = arith.truncf %106 : vector<8x32xf32> to vector<8x32xbf16>
    %108 = vector.extract_strided_slice %53 {offsets = [0, 192], sizes = [8, 32], strides = [1, 1]} : vector<8x384xf32> to vector<8x32xf32>
    %109 = arith.truncf %108 : vector<8x32xf32> to vector<8x32xbf16>
    %110 = vector.extract_strided_slice %53 {offsets = [0, 320], sizes = [8, 32], strides = [1, 1]} : vector<8x384xf32> to vector<8x32xf32>
    %111 = arith.truncf %110 : vector<8x32xf32> to vector<8x32xbf16>
    %cst_32 = arith.constant dense<0.000000e+00> : vector<8x8xf32>
    %112 = tpu.matmul %107, %109, %cst_32 {dimension_numbers = #tpu.dot_dimension_numbers<[1], [1], [0], [0], [0, 0, 1, 0], [], []>} : vector<8x32xbf16>, vector<8x32xbf16>, vector<8x8xf32> -> vector<8x8xf32>
    %cst_33 = arith.constant 0.176776692 : f32
    %113 = vector.broadcast %cst_33 : f32 to vector<8x8xf32>
    %114 = arith.mulf %112, %113 : vector<8x8xf32>
    %c2 = arith.constant 2 : index
    %c0_34 = arith.constant 0 : index
    %c0_35 = arith.constant 0 : index
    %115 = vector.load %arg11[%c2, %c0_34, %c0_35] : memref<4x8x8xf32, #tpu.memory_space<vmem>>, vector<1x8x8xf32>
    %116 = vector.shape_cast %115 : vector<1x8x8xf32> to vector<8x8xf32>
    %117 = arith.addf %114, %116 : vector<8x8xf32>
    %cst_36 = arith.constant dense<0xFF800000> : vector<8xf32>
    %118 = vector.multi_reduction <maximumf>, %117, %cst_36 [1] : vector<8x8xf32> to vector<8xf32>
    %119 = vector.shape_cast %118 : vector<8xf32> to vector<8x1xf32>
    %120 = vector.broadcast %119 : vector<8x1xf32> to vector<8x8xf32>
    %121 = arith.subf %117, %120 : vector<8x8xf32>
    %122 = math.exp %121 : vector<8x8xf32>
    %cst_37 = arith.constant dense<0.000000e+00> : vector<8xf32>
    %123 = vector.multi_reduction <add>, %122, %cst_37 [1] : vector<8x8xf32> to vector<8xf32>
    %124 = vector.shape_cast %123 : vector<8xf32> to vector<8x1xf32>
    %125 = tpu.reciprocal %124 {approx = true} : vector<8x1xf32> -> vector<8x1xf32>
    %126 = vector.broadcast %125 : vector<8x1xf32> to vector<8x8xf32>
    %127 = arith.mulf %122, %126 : vector<8x8xf32>
    %128 = arith.truncf %127 : vector<8x8xf32> to vector<8x8xbf16>
    %cst_38 = arith.constant dense<0.000000e+00> : vector<8x32xf32>
    %129 = tpu.matmul %128, %111, %cst_38 {dimension_numbers = #tpu.dot_dimension_numbers<[1], [0], [0], [1], [0, 0, 1, 1], [], []>} : vector<8x8xbf16>, vector<8x32xbf16>, vector<8x32xf32> -> vector<8x32xf32>
    %130 = arith.truncf %129 : vector<8x32xf32> to vector<8x32xbf16>
    %c0_39 = arith.constant 0 : index
    %c64 = arith.constant 64 : index
    %131 = vector.load %arg10[%c0_39, %c64] : memref<8x128xbf16, #tpu.memory_space<vmem>>, vector<8x32xbf16>
    tpu.vector_store %arg10[%c0_39, %c64], %130 {strides = array<i32>} : memref<8x128xbf16, #tpu.memory_space<vmem>>, vector<8x32xbf16>,
    %132 = vector.extract_strided_slice %53 {offsets = [0, 96], sizes = [8, 32], strides = [1, 1]} : vector<8x384xf32> to vector<8x32xf32>
    %133 = arith.truncf %132 : vector<8x32xf32> to vector<8x32xbf16>
    %134 = vector.extract_strided_slice %53 {offsets = [0, 224], sizes = [8, 32], strides = [1, 1]} : vector<8x384xf32> to vector<8x32xf32>
    %135 = arith.truncf %134 : vector<8x32xf32> to vector<8x32xbf16>
    %136 = vector.extract_strided_slice %53 {offsets = [0, 352], sizes = [8, 32], strides = [1, 1]} : vector<8x384xf32> to vector<8x32xf32>
    %137 = arith.truncf %136 : vector<8x32xf32> to vector<8x32xbf16>
    %cst_40 = arith.constant dense<0.000000e+00> : vector<8x8xf32>
    %138 = tpu.matmul %133, %135, %cst_40 {dimension_numbers = #tpu.dot_dimension_numbers<[1], [1], [0], [0], [0, 0, 1, 0], [], []>} : vector<8x32xbf16>, vector<8x32xbf16>, vector<8x8xf32> -> vector<8x8xf32>
    %cst_41 = arith.constant 0.176776692 : f32
    %139 = vector.broadcast %cst_41 : f32 to vector<8x8xf32>
    %140 = arith.mulf %138, %139 : vector<8x8xf32>
    %c3 = arith.constant 3 : index
    %c0_42 = arith.constant 0 : index
    %c0_43 = arith.constant 0 : index
    %141 = vector.load %arg11[%c3, %c0_42, %c0_43] : memref<4x8x8xf32, #tpu.memory_space<vmem>>, vector<1x8x8xf32>
    %142 = vector.shape_cast %141 : vector<1x8x8xf32> to vector<8x8xf32>
    %143 = arith.addf %140, %142 : vector<8x8xf32>
    %cst_44 = arith.constant dense<0xFF800000> : vector<8xf32>
    %144 = vector.multi_reduction <maximumf>, %143, %cst_44 [1] : vector<8x8xf32> to vector<8xf32>
    %145 = vector.shape_cast %144 : vector<8xf32> to vector<8x1xf32>
    %146 = vector.broadcast %145 : vector<8x1xf32> to vector<8x8xf32>
    %147 = arith.subf %143, %146 : vector<8x8xf32>
    %148 = math.exp %147 : vector<8x8xf32>
    %cst_45 = arith.constant dense<0.000000e+00> : vector<8xf32>
    %149 = vector.multi_reduction <add>, %148, %cst_45 [1] : vector<8x8xf32> to vector<8xf32>
    %150 = vector.shape_cast %149 : vector<8xf32> to vector<8x1xf32>
    %151 = tpu.reciprocal %150 {approx = true} : vector<8x1xf32> -> vector<8x1xf32>
    %152 = vector.broadcast %151 : vector<8x1xf32> to vector<8x8xf32>
    %153 = arith.mulf %148, %152 : vector<8x8xf32>
    %154 = arith.truncf %153 : vector<8x8xf32> to vector<8x8xbf16>
    %cst_46 = arith.constant dense<0.000000e+00> : vector<8x32xf32>
    %155 = tpu.matmul %154, %137, %cst_46 {dimension_numbers = #tpu.dot_dimension_numbers<[1], [0], [0], [1], [0, 0, 1, 1], [], []>} : vector<8x8xbf16>, vector<8x32xbf16>, vector<8x32xf32> -> vector<8x32xf32>
    %156 = arith.truncf %155 : vector<8x32xf32> to vector<8x32xbf16>
    %c0_47 = arith.constant 0 : index
    %c96 = arith.constant 96 : index
    %157 = vector.load %arg10[%c0_47, %c96] : memref<8x128xbf16, #tpu.memory_space<vmem>>, vector<8x32xbf16>
    tpu.vector_store %arg10[%c0_47, %c96], %156 {strides = array<i32>} : memref<8x128xbf16, #tpu.memory_space<vmem>>, vector<8x32xbf16>,
    %c0_48 = arith.constant 0 : index
    %c0_49 = arith.constant 0 : index
    %158 = vector.load %arg10[%c0_48, %c0_49] : memref<8x128xbf16, #tpu.memory_space<vmem>>, vector<8x128xbf16>
    %c0_50 = arith.constant 0 : index
    %c0_51 = arith.constant 0 : index
    %c0_52 = arith.constant 0 : index
    %159 = vector.load %arg6[%c0_50, %c0_51, %c0_52] : memref<1x128x128xbf16, #tpu.memory_space<vmem>>, vector<1x128x128xbf16>
    %160 = vector.shape_cast %159 : vector<1x128x128xbf16> to vector<128x128xbf16>
    %cst_53 = arith.constant dense<0.000000e+00> : vector<8x128xf32>
    %161 = tpu.matmul %158, %160, %cst_53 {dimension_numbers = #tpu.dot_dimension_numbers<[1], [0], [0], [1], [0, 0, 1, 1], [], []>} : vector<8x128xbf16>, vector<128x128xbf16>, vector<8x128xf32> -> vector<8x128xf32>
    %162 = vector.shape_cast %18 : vector<128xf32> to vector<1x128xf32>
    %163 = vector.broadcast %162 : vector<1x128xf32> to vector<8x128xf32>
    %164 = arith.addf %161, %163 : vector<8x128xf32>
    %165 = arith.addf %164, %4 : vector<8x128xf32>
    %cst_54 = arith.constant dense<0.000000e+00> : vector<8xf32>
    %166 = vector.multi_reduction <add>, %165, %cst_54 [1] : vector<8x128xf32> to vector<8xf32>
    %167 = vector.shape_cast %166 : vector<8xf32> to vector<8x1xf32>
    %cst_55 = arith.constant 1.280000e+02 : f32
    %168 = vector.broadcast %cst_55 : f32 to vector<8x1xf32>
    %169 = arith.divf %167, %168 : vector<8x1xf32>
    %170 = vector.broadcast %169 : vector<8x1xf32> to vector<8x128xf32>
    %171 = arith.subf %165, %170 : vector<8x128xf32>
    %172 = arith.mulf %171, %171 : vector<8x128xf32>
    %cst_56 = arith.constant dense<0.000000e+00> : vector<8xf32>
    %173 = vector.multi_reduction <add>, %172, %cst_56 [1] : vector<8x128xf32> to vector<8xf32>
    %174 = vector.shape_cast %173 : vector<8xf32> to vector<8x1xf32>
    %cst_57 = arith.constant 1.280000e+02 : f32
    %175 = vector.broadcast %cst_57 : f32 to vector<8x1xf32>
    %176 = arith.divf %174, %175 : vector<8x1xf32>
    %177 = vector.broadcast %169 : vector<8x1xf32> to vector<8x128xf32>
    %178 = arith.subf %165, %177 : vector<8x128xf32>
    %cst_58 = arith.constant 9.99999974E-6 : f32
    %179 = vector.broadcast %cst_58 : f32 to vector<8x1xf32>
    %180 = arith.addf %176, %179 : vector<8x1xf32>
    %181 = math.rsqrt %180 : vector<8x1xf32>
    %182 = vector.broadcast %181 : vector<8x1xf32> to vector<8x128xf32>
    %183 = arith.mulf %178, %182 : vector<8x128xf32>
    %184 = vector.shape_cast %12 : vector<128xf32> to vector<1x128xf32>
    %185 = vector.broadcast %184 : vector<1x128xf32> to vector<8x128xf32>
    %186 = arith.mulf %183, %185 : vector<8x128xf32>
    %187 = vector.shape_cast %14 : vector<128xf32> to vector<1x128xf32>
    %188 = vector.broadcast %187 : vector<1x128xf32> to vector<8x128xf32>
    %189 = arith.addf %186, %188 : vector<8x128xf32>
    %190 = arith.truncf %189 : vector<8x128xf32> to vector<8x128xbf16>
    %c0_59 = arith.constant 0 : index
    %c0_60 = arith.constant 0 : index
    %c0_61 = arith.constant 0 : index
    %191 = vector.load %arg7[%c0_59, %c0_60, %c0_61] : memref<1x128x512xbf16, #tpu.memory_space<vmem>>, vector<1x128x512xbf16>
    %192 = vector.shape_cast %191 : vector<1x128x512xbf16> to vector<128x512xbf16>
    %cst_62 = arith.constant dense<0.000000e+00> : vector<8x512xf32>
    %193 = tpu.matmul %190, %192, %cst_62 {dimension_numbers = #tpu.dot_dimension_numbers<[1], [0], [0], [1], [0, 0, 1, 1], [], []>} : vector<8x128xbf16>, vector<128x512xbf16>, vector<8x512xf32> -> vector<8x512xf32>
    %194 = vector.shape_cast %20 : vector<512xf32> to vector<1x512xf32>
    %195 = vector.broadcast %194 : vector<1x512xf32> to vector<8x512xf32>
    %196 = arith.addf %193, %195 : vector<8x512xf32>
    %cst_63 = arith.constant 5.000000e-01 : f32
    %197 = vector.broadcast %cst_63 : f32 to vector<8x512xf32>
    %198 = arith.mulf %197, %196 : vector<8x512xf32>
    %cst_64 = arith.constant 4.471500e-02 : f32
    %199 = vector.broadcast %cst_64 : f32 to vector<8x512xf32>
    %200 = arith.mulf %199, %196 : vector<8x512xf32>
    %201 = arith.mulf %200, %196 : vector<8x512xf32>
    %202 = arith.mulf %201, %196 : vector<8x512xf32>
    %203 = arith.addf %196, %202 : vector<8x512xf32>
    %cst_65 = arith.constant 0.797884583 : f32
    %204 = vector.broadcast %cst_65 : f32 to vector<8x512xf32>
    %205 = arith.mulf %204, %203 : vector<8x512xf32>
    %206 = math.tanh %205 : vector<8x512xf32>
    %cst_66 = arith.constant 1.000000e+00 : f32
    %207 = vector.broadcast %cst_66 : f32 to vector<8x512xf32>
    %208 = arith.addf %207, %206 : vector<8x512xf32>
    %209 = arith.mulf %198, %208 : vector<8x512xf32>
    %210 = arith.truncf %209 : vector<8x512xf32> to vector<8x512xbf16>
    %c0_67 = arith.constant 0 : index
    %c0_68 = arith.constant 0 : index
    %c0_69 = arith.constant 0 : index
    %211 = vector.load %arg8[%c0_67, %c0_68, %c0_69] : memref<1x512x128xbf16, #tpu.memory_space<vmem>>, vector<1x512x128xbf16>
    %212 = vector.shape_cast %211 : vector<1x512x128xbf16> to vector<512x128xbf16>
    %cst_70 = arith.constant dense<0.000000e+00> : vector<8x128xf32>
    %213 = tpu.matmul %210, %212, %cst_70 {dimension_numbers = #tpu.dot_dimension_numbers<[1], [0], [0], [1], [0, 0, 1, 1], [], []>} : vector<8x512xbf16>, vector<512x128xbf16>, vector<8x128xf32> -> vector<8x128xf32>
    %214 = vector.shape_cast %22 : vector<128xf32> to vector<1x128xf32>
    %215 = vector.broadcast %214 : vector<1x128xf32> to vector<8x128xf32>
    %216 = arith.addf %213, %215 : vector<8x128xf32>
    %217 = arith.addf %216, %165 : vector<8x128xf32>
    %c2_71 = arith.constant 2 : index
    %c0_72 = arith.constant 0 : index
    %218 = vector.load %arg3[%c2_71, %c0_72] : memref<4x128xf32, #tpu.memory_space<vmem>>, vector<1x128xf32>
    %219 = vector.shape_cast %218 : vector<1x128xf32> to vector<128xf32>
    %c3_73 = arith.constant 3 : index
    %c0_74 = arith.constant 0 : index
    %220 = vector.load %arg3[%c3_73, %c0_74] : memref<4x128xf32, #tpu.memory_space<vmem>>, vector<1x128xf32>
    %221 = vector.shape_cast %220 : vector<1x128xf32> to vector<128xf32>
    %cst_75 = arith.constant dense<0.000000e+00> : vector<8xf32>
    %222 = vector.multi_reduction <add>, %217, %cst_75 [1] : vector<8x128xf32> to vector<8xf32>
    %223 = vector.shape_cast %222 : vector<8xf32> to vector<8x1xf32>
    %cst_76 = arith.constant 1.280000e+02 : f32
    %224 = vector.broadcast %cst_76 : f32 to vector<8x1xf32>
    %225 = arith.divf %223, %224 : vector<8x1xf32>
    %226 = vector.broadcast %225 : vector<8x1xf32> to vector<8x128xf32>
    %227 = arith.subf %217, %226 : vector<8x128xf32>
    %228 = arith.mulf %227, %227 : vector<8x128xf32>
    %cst_77 = arith.constant dense<0.000000e+00> : vector<8xf32>
    %229 = vector.multi_reduction <add>, %228, %cst_77 [1] : vector<8x128xf32> to vector<8xf32>
    %230 = vector.shape_cast %229 : vector<8xf32> to vector<8x1xf32>
    %cst_78 = arith.constant 1.280000e+02 : f32
    %231 = vector.broadcast %cst_78 : f32 to vector<8x1xf32>
    %232 = arith.divf %230, %231 : vector<8x1xf32>
    %233 = vector.broadcast %225 : vector<8x1xf32> to vector<8x128xf32>
    %234 = arith.subf %217, %233 : vector<8x128xf32>
    %cst_79 = arith.constant 9.99999974E-6 : f32
    %235 = vector.broadcast %cst_79 : f32 to vector<8x1xf32>
    %236 = arith.addf %232, %235 : vector<8x1xf32>
    %237 = math.rsqrt %236 : vector<8x1xf32>
    %238 = vector.broadcast %237 : vector<8x1xf32> to vector<8x128xf32>
    %239 = arith.mulf %234, %238 : vector<8x128xf32>
    %240 = vector.shape_cast %219 : vector<128xf32> to vector<1x128xf32>
    %241 = vector.broadcast %240 : vector<1x128xf32> to vector<8x128xf32>
    %242 = arith.mulf %239, %241 : vector<8x128xf32>
    %243 = vector.shape_cast %221 : vector<128xf32> to vector<1x128xf32>
    %244 = vector.broadcast %243 : vector<1x128xf32> to vector<8x128xf32>
    %245 = arith.addf %242, %244 : vector<8x128xf32>
    %c1_i32 = arith.constant 1 : i32
    %246 = arith.cmpi eq, %arg1, %c1_i32 : i32
    %247 = arith.select %246, %245, %217 : vector<8x128xf32>
    %c0_80 = arith.constant 0 : index
    %c0_81 = arith.constant 0 : index
    %c0_82 = arith.constant 0 : index
    %248 = vector.load %arg9[%c0_80, %c0_81, %c0_82] : memref<1x8x128xf32, #tpu.memory_space<vmem>>, vector<1x8x128xf32>
    %249 = vector.shape_cast %248 : vector<1x8x128xf32> to vector<8x128xf32>
    %250 = vector.shape_cast %247 : vector<8x128xf32> to vector<1x8x128xf32>
    tpu.vector_store %arg9[%c0_80, %c0_81, %c0_82], %250 {strides = array<i32>} : memref<1x8x128xf32, #tpu.memory_space<vmem>>, vector<1x8x128xf32>,
    return
  }
  func.func @transform_0(%arg0: i32, %arg1: i32) -> (i32, i32, i32) {
    %c0_i32 = arith.constant 0 : i32
    %c0_i32_0 = arith.constant 0 : i32
    %c0_i32_1 = arith.constant 0 : i32
    return %arg0, %c0_i32, %c0_i32_0 : i32, i32, i32
  }
  func.func @transform_1(%arg0: i32, %arg1: i32) -> (i32, i32) {
    %c0_i32 = arith.constant 0 : i32
    %c0_i32_0 = arith.constant 0 : i32
    %c0_i32_1 = arith.constant 0 : i32
    return %c0_i32, %c0_i32_0 : i32, i32
  }
  func.func @transform_2(%arg0: i32, %arg1: i32) -> (i32, i32, i32) {
    %c0_i32 = arith.constant 0 : i32
    %c0_i32_0 = arith.constant 0 : i32
    %c0_i32_1 = arith.constant 0 : i32
    return %arg1, %c0_i32, %c0_i32_0 : i32, i32, i32
  }
  func.func @transform_3(%arg0: i32, %arg1: i32) -> (i32, i32, i32) {
    %c0_i32 = arith.constant 0 : i32
    %c0_i32_0 = arith.constant 0 : i32
    %c0_i32_1 = arith.constant 0 : i32
    return %arg1, %c0_i32, %c0_i32_0 : i32, i32, i32
  }
  func.func @transform_4(%arg0: i32, %arg1: i32) -> (i32, i32, i32) {
    %c0_i32 = arith.constant 0 : i32
    %c0_i32_0 = arith.constant 0 : i32
    %c0_i32_1 = arith.constant 0 : i32
    return %arg1, %c0_i32, %c0_i32_0 : i32, i32, i32
  }
  func.func @transform_5(%arg0: i32, %arg1: i32) -> (i32, i32, i32) {
    %c0_i32 = arith.constant 0 : i32
    %c0_i32_0 = arith.constant 0 : i32
    %c0_i32_1 = arith.constant 0 : i32
    return %arg1, %c0_i32, %c0_i32_0 : i32, i32, i32
  }
  func.func @transform_6(%arg0: i32, %arg1: i32) -> (i32, i32, i32) {
    %c0_i32 = arith.constant 0 : i32
    %c0_i32_0 = arith.constant 0 : i32
    %c0_i32_1 = arith.constant 0 : i32
    return %arg1, %c0_i32, %c0_i32_0 : i32, i32, i32
  }
  func.func @transform_7(%arg0: i32, %arg1: i32) -> (i32, i32, i32) {
    %c0_i32 = arith.constant 0 : i32
    %c0_i32_0 = arith.constant 0 : i32
    %c0_i32_1 = arith.constant 0 : i32
    return %arg0, %c0_i32, %c0_i32_0 : i32, i32, i32
  }
}

</mosaic_0001>

<llo_original>
// kernel: bloom_forward.1
$region0: #{bloom_forward.1}
  #allocation0 [shape = 'u32[]', space=smem, size = 0x4, offset = 0x4, fixed_abs, tag = 'smem constant byte address 0x4 - core index']
  #allocation1 [shape = 'u32[144,128]{1,0:T(1,128)}', space=vmem, size = 0x12000, scoped, tag = 'internal scratch']
  #allocation2 [shape = 'bf16[8,128]{1,0:T(8,128)(2,1)}', space=vmem, size = 0x800, scoped, tag = 'scratch operand']
  #allocation3 [shape = 'f32[4,8,8]{2,1,0:T(8,128)}', space=vmem, size = 0x4000, scoped, tag = 'scratch operand']
  %s0 = inlined_call_operand.vmem [shape: f32[2,8,128], index: 0, kind: input, shape index: {}]
  %s1 = inlined_call_operand.vmem [shape: f32[4,128], index: 1, kind: input, shape index: {}]
  %s2 = inlined_call_operand.hbm [shape: f32[2,8,512], index: 2, kind: input, shape index: {}]
  %s3 = inlined_call_operand.hbm [shape: bf16[2,128,384], index: 3, kind: input, shape index: {}]
  %s4 = inlined_call_operand.vmem [shape: bf16[2,128,128], index: 4, kind: input, shape index: {}]
  %s5 = inlined_call_operand.hbm [shape: bf16[2,128,512], index: 5, kind: input, shape index: {}]
  %s6 = inlined_call_operand.hbm [shape: bf16[2,512,128], index: 6, kind: input, shape index: {}]
  %s7 = inlined_call_operand.hbm [shape: f32[2,8,128], index: 7, kind: output, shape index: {}]
  %s8 = sld [smem:[#allocation0]]
  $region81: #{bloom_forward.1} parent=0
    _
  %s10 = ssub.s32 1, %s8
  %s11 = scalar_select 0, %s10, %s8
  $region1: #{bloom_forward.1} parent=0
    #allocation4 [shape = 'u8[32768]{0}', space=vmem, size = 0x8000, scoped, tag = 'input window, operand 2']
    #allocation5 [shape = 's32[2]{0}', space=sflag, size = 0x8, scoped, tag = 'scoped memory for bloom_forward.1']
    #allocation6 [shape = 's32[2]{0}', space=sflag, size = 0x8, scoped, tag = 'scoped memory for bloom_forward.1']
    #allocation7 [shape = 'u8[196608]{0}', space=vmem, size = 0x30000, scoped, tag = 'input window, operand 3']
    #allocation8 [shape = 's32[2]{0}', space=sflag, size = 0x8, scoped, tag = 'scoped memory for bloom_forward.1']
    #allocation9 [shape = 'u8[262144]{0}', space=vmem, size = 0x40000, scoped, tag = 'input window, operand 5']
    #allocation10 [shape = 'u8[262144]{0}', space=vmem, size = 0x40000, scoped, tag = 'input window, operand 6']
    #allocation11 [shape = 's32[2]{0}', space=sflag, size = 0x8, scoped, tag = 'scoped memory for bloom_forward.1']
    #allocation12 [shape = 'u8[8192]{0}', space=vmem, size = 0x2000, scoped, tag = 'output window, operand 0']
    %12 = vsyncpa [#allocation5], 0
    %s13 = scalar_lea.sflag [#allocation5], 1
    %14 = vsyncpa %s13, 0
    %15 = vsyncpa [#allocation8], 0
    %s16 = scalar_lea.sflag [#allocation8], 1
    %17 = vsyncpa %s16, 0
    %18 = vsyncpa [#allocation11], 0
    %s19 = scalar_lea.sflag [#allocation11], 1
    %20 = vsyncpa %s19, 0
    %21 = vsyncpa [#allocation6], 0
    %s22 = scalar_lea.sflag [#allocation6], 1
    %23 = vsyncpa %s22, 0
    loop: start=0, step=1, limit=6
    $region2: #{bloom_forward.1} parent=1 // loop_pre_header
      _
    $region3: #{bloom_forward.1} parent=1 // loop_header
      %s25 = sphi 0, %s29
      %p26 = scmp.ge.s32.totalorder %s25, 6
      %s32 = sphi 0, %s44
      %s33 = sphi 0, %s40
      %s34 = sphi 0, %s32
      %s35 = sphi 0, %s33
      %s36 = sphi 0, %s34
      %s37 = sphi 0, %s35
      %s47 = sphi 0, %s49
      %s50 = sphi 0, %s47
      %s51 = sphi 0, %s50
      %s67 = sphi 0, %s51
      %s71 = sphi 0, %s71
      %s73 = sphi 0, %s71
      %s74 = sphi 0, %s73
      %s88 = sphi 0, %s74
      %s94 = sphi 0, %s96
      %s97 = sphi 0, %s94
      %s98 = sphi 0, %s97
      %s114 = sphi 0, %s98
      %s120 = sphi 0, %s122
      %s123 = sphi 0, %s120
      %s124 = sphi 0, %s123
      %s140 = sphi 0, %s124
      %s146 = sphi 0, %s148
      %s149 = sphi 0, %s146
      %s150 = sphi 0, %s149
      %s166 = sphi 0, %s150
      %s172 = sphi 0, %s174
      %s175 = sphi 0, %s172
      %s176 = sphi 0, %s175
      %s192 = sphi 0, %s176
      %s198 = sphi 0, %s200
      %s201 = sphi 0, %s198
      %s202 = sphi 0, %s201
      %s218 = sphi 0, %s202
      %s224 = sphi 0, %s226
      %s227 = sphi 0, %s224
      %s228 = sphi 0, %s227
      %s244 = sphi 0, %s228
    $region4: #{bloom_forward.1} parent=1 // loop_header_branch
      %28 = sbr.rel (%p26) target = $region8
    $region5: #{bloom_forward.1} parent=1 // loop_body
      %s30 = ssub.s32 %s25, 1
      %s31 = ssub.s32 %s25, 2
      %s38 = sadd.s32 1, %s33
      %p39 = scmp.ge.s32.totalorder %s38, 2
      %s40 = scalar_select %p39, 0, %s38
      %s41 = sadd.s32 1, %s32
      %s42 = scalar_select %p39, %s41, %s32
      %p43 = scmp.ge.s32.totalorder %s42, 2
      %s44 = scalar_select %p43, 0, %s42
      %s45 = ssub.s32 %s32, %s44
      %p46 = scmp.eq.s32.totalorder %s45, 0
      %s48 = sadd.s32 %s47, 1
      %s49 = scalar_select %p46, %s47, %s48
      %p52 = pneg %p46
      %p53 = scmp.eq.s32.totalorder %s25, 3
      %p54 = por %p52, %p53
      %p55 = scmp.ne.s32.totalorder %s47, %s50
      %p56 = scmp.eq.s32.totalorder %s25, 0
      %p57 = por %p55, %p56
      %p58 = scmp.ne.s32.totalorder %s47, %s50
      %p59 = scmp.eq.s32.totalorder %s30, 3
      %p60 = por %p58, %p59
      %p61 = scmp.ne.s32.totalorder %s50, %s51
      %p62 = scmp.eq.s32.totalorder %s30, 0
      %p63 = por %p61, %p62
      %p64 = scmp.ne.s32.totalorder %s50, %s51
      %p65 = scmp.eq.s32.totalorder %s31, 3
      %p66 = por %p64, %p65
      %p68 = scmp.ne.s32.totalorder %s51, %s67
      %p69 = scmp.eq.s32.totalorder %s31, 0
      %p70 = por %p68, %p69
      %s72 = sadd.s32 %s71, 1
      %p75 = scmp.eq.s32.totalorder %s25, 3
      %p76 = scmp.ne.s32.totalorder %s71, %s73
      %p77 = scmp.eq.s32.totalorder %s25, 0
      %p78 = por %p76, %p77
      %p79 = scmp.ne.s32.totalorder %s71, %s73
      %p80 = scmp.eq.s32.totalorder %s30, 3
      %p81 = por %p79, %p80
      %p82 = scmp.ne.s32.totalorder %s73, %s74
      %p83 = scmp.eq.s32.totalorder %s30, 0
      %p84 = por %p82, %p83
      %p85 = scmp.ne.s32.totalorder %s73, %s74
      %p86 = scmp.eq.s32.totalorder %s31, 3
      %p87 = por %p85, %p86
      %p89 = scmp.ne.s32.totalorder %s74, %s88
      %p90 = scmp.eq.s32.totalorder %s31, 0
      %p91 = por %p89, %p90
      %s92 = ssub.s32 %s33, %s40
      %p93 = scmp.eq.s32.totalorder %s92, 0
      %s95 = sadd.s32 %s94, 1
      %s96 = scalar_select %p93, %s94, %s95
      %p99 = pneg %p93
      %p100 = scmp.eq.s32.totalorder %s25, 3
      %p101 = por %p99, %p100
      %p102 = scmp.ne.s32.totalorder %s94, %s97
      %p103 = scmp.eq.s32.totalorder %s25, 0
      %p104 = por %p102, %p103
      %p105 = scmp.ne.s32.totalorder %s94, %s97
      %p106 = scmp.eq.s32.totalorder %s30, 3
      %p107 = por %p105, %p106
      %p108 = scmp.ne.s32.totalorder %s97, %s98
      %p109 = scmp.eq.s32.totalorder %s30, 0
      %p110 = por %p108, %p109
      %p111 = scmp.ne.s32.totalorder %s97, %s98
      %p112 = scmp.eq.s32.totalorder %s31, 3
      %p113 = por %p111, %p112
      %p115 = scmp.ne.s32.totalorder %s98, %s114
      %p116 = scmp.eq.s32.totalorder %s31, 0
      %p117 = por %p115, %p116
      %s118 = ssub.s32 %s33, %s40
      %p119 = scmp.eq.s32.totalorder %s118, 0
      %s121 = sadd.s32 %s120, 1
      %s122 = scalar_select %p119, %s120, %s121
      %p125 = pneg %p119
      %p126 = scmp.eq.s32.totalorder %s25, 3
      %p127 = por %p125, %p126
      %p128 = scmp.ne.s32.totalorder %s120, %s123
      %p129 = scmp.eq.s32.totalorder %s25, 0
      %p130 = por %p128, %p129
      %p131 = scmp.ne.s32.totalorder %s120, %s123
      %p132 = scmp.eq.s32.totalorder %s30, 3
      %p133 = por %p131, %p132
      %p134 = scmp.ne.s32.totalorder %s123, %s124
      %p135 = scmp.eq.s32.totalorder %s30, 0
      %p136 = por %p134, %p135
      %p137 = scmp.ne.s32.totalorder %s123, %s124
      %p138 = scmp.eq.s32.totalorder %s31, 3
      %p139 = por %p137, %p138
      %p141 = scmp.ne.s32.totalorder %s124, %s140
      %p142 = scmp.eq.s32.totalorder %s31, 0
      %p143 = por %p141, %p142
      %s144 = ssub.s32 %s33, %s40
      %p145 = scmp.eq.s32.totalorder %s144, 0
      %s147 = sadd.s32 %s146, 1
      %s148 = scalar_select %p145, %s146, %s147
      %p151 = pneg %p145
      %p152 = scmp.eq.s32.totalorder %s25, 3
      %p153 = por %p151, %p152
      %p154 = scmp.ne.s32.totalorder %s146, %s149
      %p155 = scmp.eq.s32.totalorder %s25, 0
      %p156 = por %p154, %p155
      %p157 = scmp.ne.s32.totalorder %s146, %s149
      %p158 = scmp.eq.s32.totalorder %s30, 3
      %p159 = por %p157, %p158
      %p160 = scmp.ne.s32.totalorder %s149, %s150
      %p161 = scmp.eq.s32.totalorder %s30, 0
      %p162 = por %p160, %p161
      %p163 = scmp.ne.s32.totalorder %s149, %s150
      %p164 = scmp.eq.s32.totalorder %s31, 3
      %p165 = por %p163, %p164
      %p167 = scmp.ne.s32.totalorder %s150, %s166
      %p168 = scmp.eq.s32.totalorder %s31, 0
      %p169 = por %p167, %p168
      %s170 = ssub.s32 %s33, %s40
      %p171 = scmp.eq.s32.totalorder %s170, 0
      %s173 = sadd.s32 %s172, 1
      %s174 = scalar_select %p171, %s172, %s173
      %p177 = pneg %p171
      %p178 = scmp.eq.s32.totalorder %s25, 3
      %p179 = por %p177, %p178
      %p180 = scmp.ne.s32.totalorder %s172, %s175
      %p181 = scmp.eq.s32.totalorder %s25, 0
      %p182 = por %p180, %p181
      %p183 = scmp.ne.s32.totalorder %s172, %s175
      %p184 = scmp.eq.s32.totalorder %s30, 3
      %p185 = por %p183, %p184
      %p186 = scmp.ne.s32.totalorder %s175, %s176
      %p187 = scmp.eq.s32.totalorder %s30, 0
      %p188 = por %p186, %p187
      %p189 = scmp.ne.s32.totalorder %s175, %s176
      %p190 = scmp.eq.s32.totalorder %s31, 3
      %p191 = por %p189, %p190
      %p193 = scmp.ne.s32.totalorder %s176, %s192
      %p194 = scmp.eq.s32.totalorder %s31, 0
      %p195 = por %p193, %p194
      %s196 = ssub.s32 %s33, %s40
      %p197 = scmp.eq.s32.totalorder %s196, 0
      %s199 = sadd.s32 %s198, 1
      %s200 = scalar_select %p197, %s198, %s199
      %p203 = pneg %p197
      %p204 = scmp.eq.s32.totalorder %s25, 3
      %p205 = por %p203, %p204
      %p206 = scmp.ne.s32.totalorder %s198, %s201
      %p207 = scmp.eq.s32.totalorder %s25, 0
      %p208 = por %p206, %p207
      %p209 = scmp.ne.s32.totalorder %s198, %s201
      %p210 = scmp.eq.s32.totalorder %s30, 3
      %p211 = por %p209, %p210
      %p212 = scmp.ne.s32.totalorder %s201, %s202
      %p213 = scmp.eq.s32.totalorder %s30, 0
      %p214 = por %p212, %p213
      %p215 = scmp.ne.s32.totalorder %s201, %s202
      %p216 = scmp.eq.s32.totalorder %s31, 3
      %p217 = por %p215, %p216
      %p219 = scmp.ne.s32.totalorder %s202, %s218
      %p220 = scmp.eq.s32.totalorder %s31, 0
      %p221 = por %p219, %p220
      %s222 = ssub.s32 %s32, %s44
      %p223 = scmp.eq.s32.totalorder %s222, 0
      %s225 = sadd.s32 %s224, 1
      %s226 = scalar_select %p223, %s224, %s225
      %p229 = pneg %p223
      %p230 = scmp.eq.s32.totalorder %s25, 3
      %p231 = por %p229, %p230
      %p232 = scmp.ne.s32.totalorder %s224, %s227
      %p233 = scmp.eq.s32.totalorder %s25, 0
      %p234 = por %p232, %p233
      %p235 = scmp.ne.s32.totalorder %s224, %s227
      %p236 = scmp.eq.s32.totalorder %s30, 3
      %p237 = por %p235, %p236
      %p238 = scmp.ne.s32.totalorder %s227, %s228
      %p239 = scmp.eq.s32.totalorder %s30, 0
      %p240 = por %p238, %p239
      %p241 = scmp.ne.s32.totalorder %s227, %s228
      %p242 = scmp.eq.s32.totalorder %s31, 3
      %p243 = por %p241, %p242
      %p245 = scmp.ne.s32.totalorder %s228, %s244
      %p246 = scmp.eq.s32.totalorder %s31, 0
      %p247 = por %p245, %p246
      %p248 = scmp.le.s32.totalorder 1, %s25
      %p249 = scmp.lt.s32.totalorder %s25, 5
      %p250 = pnand %p248, %p249
      %p251 = pneg %p250
      // Predicated region
      $region9: #{bloom_forward.1} parent=5 // pred_check
        _
      $region10: #{bloom_forward.1} parent=5 // pred_check_branch
        %253 = sbr.rel (%p250) target = $region12
      $region11: #{bloom_forward.1} parent=5 // pred_region
        %s254 = ssub.s32 %s25, 1
        // Predicated region
        $region13: #{bloom_forward.1} parent=11 // pred_check
          %p255 = pneg %p84
        $region14: #{bloom_forward.1} parent=11 // pred_check_branch
          %257 = sbr.rel (%p255) target = $region16
        $region15: #{bloom_forward.1} parent=11 // pred_region
          _
        $region16: #{bloom_forward.1} parent=11 // pred_fallthru
          _
      $region12: #{bloom_forward.1} parent=5 // pred_fallthru
        _
      %p258 = scmp.lt.s32.totalorder %s25, 4
      // Predicated region
      $region17: #{bloom_forward.1} parent=5 // pred_check
        %p259 = pneg %p258
      $region18: #{bloom_forward.1} parent=5 // pred_check_branch
        %261 = sbr.rel (%p259) target = $region20
      $region19: #{bloom_forward.1} parent=5 // pred_region
        // Predicated region
        $region21: #{bloom_forward.1} parent=19 // pred_check
          %p262 = pneg %p57
        $region22: #{bloom_forward.1} parent=19 // pred_check_branch
          %264 = sbr.rel (%p262) target = $region24
        $region23: #{bloom_forward.1} parent=19 // pred_region
          %p265 = scmp.lt.s32.totalorder %s32, 1
          %s266 = scalar_select %p265, %s32, 1
          %s267 = smul.addr %s266, 8
          %s268 = scalar_lea.vmem %s0, %s267
        $region24: #{bloom_forward.1} parent=19 // pred_fallthru
          _
        // Predicated region
        $region25: #{bloom_forward.1} parent=19 // pred_check
          %p269 = pneg %p104
        $region26: #{bloom_forward.1} parent=19 // pred_check_branch
          %271 = sbr.rel (%p269) target = $region28
        $region27: #{bloom_forward.1} parent=19 // pred_region
          %s272 = sand.u32 %s94, 1
          %s273 = scalar_lea.sflag [#allocation5], %s272
          %s274 = sand.u32 %s94, 1
          %s275 = smul.addr %s274, 32
          %s276 = scalar_lea.vmem [#allocation4], %s275
          %s278 = ssub.s32 512, 512
          %279 = vsyncadd %s273, %s278
          %s280 = smul.addr %s33, 4
          %s281 = smul.addr %s280, 128
          %s282 = scalar_lea.hbm %s2, %s281
          %s284 = sshll.u32 %s276, 4
          %s285 = int_to_ptr.vmem [resolvable:$true] %s284
          %287 = dma.hbm_to_vmem [thread:$0]  %s282, 512, %s285, %s273
        $region28: #{bloom_forward.1} parent=19 // pred_fallthru
          _
        // Predicated region
        $region29: #{bloom_forward.1} parent=19 // pred_check
          %p288 = pneg %p130
        $region30: #{bloom_forward.1} parent=19 // pred_check_branch
          %290 = sbr.rel (%p288) target = $region32
        $region31: #{bloom_forward.1} parent=19 // pred_region
          %s291 = sand.u32 %s25, 1
          %s292 = scalar_lea.sflag [#allocation8], %s291
          %s293 = sand.u32 %s120, 1
          %s294 = smul.addr %s293, 192
          %s295 = scalar_lea.vmem [#allocation7], %s294
          %s297 = ssub.s32 3072, 3072
          %298 = vsyncadd %s292, %s297
          %s299 = smul.addr %s33, 48
          %s300 = smul.addr %s299, 64
          %s301 = scalar_lea.hbm %s3, %s300
          %s302 = sshll.u32 %s295, 4
          %s303 = int_to_ptr.vmem [resolvable:$true] %s302
          %308 = dma.hbm_to_vmem [thread:$0]  %s301, 3072, %s303, %s292, 192, 192, 12
        $region32: #{bloom_forward.1} parent=19 // pred_fallthru
          _
        // Predicated region
        $region33: #{bloom_forward.1} parent=19 // pred_check
          %p309 = pneg %p156
        $region34: #{bloom_forward.1} parent=19 // pred_check_branch
          %311 = sbr.rel (%p309) target = $region36
        $region35: #{bloom_forward.1} parent=19 // pred_region
          %p312 = scmp.lt.s32.totalorder %s33, 1
          %s313 = scalar_select %p312, %s33, 1
          %s314 = smul.addr %s313, 16
          %s315 = smul.addr %s314, 4
          %s316 = scalar_lea.vmem %s4, %s315
        $region36: #{bloom_forward.1} parent=19 // pred_fallthru
          _
        // Predicated region
        $region37: #{bloom_forward.1} parent=19 // pred_check
          %p317 = pneg %p182
        $region38: #{bloom_forward.1} parent=19 // pred_check_branch
          %319 = sbr.rel (%p317) target = $region40
        $region39: #{bloom_forward.1} parent=19 // pred_region
          %s320 = sand.u32 %s25, 1
          %s321 = scalar_lea.sflag [#allocation8], %s320
          %s322 = sand.u32 %s172, 1
          %s323 = smul.addr %s322, 256
          %s324 = scalar_lea.vmem [#allocation9], %s323
          %s326 = ssub.s32 4096, 4096
          %327 = vsyncadd %s321, %s326
          %s328 = smul.addr %s33, 64
          %s329 = smul.addr %s328, 64
          %s330 = scalar_lea.hbm %s5, %s329
          %s331 = sshll.u32 %s324, 4
          %s332 = int_to_ptr.vmem [resolvable:$true] %s331
          %337 = dma.hbm_to_vmem [thread:$0]  %s330, 4096, %s332, %s321, 256, 256, 16
        $region40: #{bloom_forward.1} parent=19 // pred_fallthru
          _
        // Predicated region
        $region41: #{bloom_forward.1} parent=19 // pred_check
          %p338 = pneg %p208
        $region42: #{bloom_forward.1} parent=19 // pred_check_branch
          %340 = sbr.rel (%p338) target = $region44
        $region43: #{bloom_forward.1} parent=19 // pred_region
          %s341 = sand.u32 %s198, 1
          %s342 = scalar_lea.sflag [#allocation11], %s341
          %s343 = sand.u32 %s198, 1
          %s344 = smul.addr %s343, 256
          %s345 = scalar_lea.vmem [#allocation10], %s344
          %s347 = ssub.s32 4096, 4096
          %348 = vsyncadd %s342, %s347
          %s349 = smul.addr %s33, 64
          %s350 = smul.addr %s349, 64
          %s351 = scalar_lea.hbm %s6, %s350
          %s352 = sshll.u32 %s345, 4
          %s353 = int_to_ptr.vmem [resolvable:$true] %s352
          %358 = dma.hbm_to_vmem [thread:$0]  %s351, 4096, %s353, %s342, 64, 64, 4
        $region44: #{bloom_forward.1} parent=19 // pred_fallthru
          _
      $region20: #{bloom_forward.1} parent=5 // pred_fallthru
        _
      %p359 = scmp.le.s32.totalorder 1, %s25
      %p360 = scmp.lt.s32.totalorder %s25, 5
      %p361 = pnand %p359, %p360
      %p362 = pneg %p361
      // Predicated region
      $region45: #{bloom_forward.1} parent=5 // pred_check
        _
      $region46: #{bloom_forward.1} parent=5 // pred_check_branch
        %364 = sbr.rel (%p361) target = $region48
      $region47: #{bloom_forward.1} parent=5 // pred_region
        %s365 = ssub.s32 %s25, 1
        %s366 = sand.u32 %s97, 1
        %s367 = scalar_lea.sflag [#allocation5], %s366
        %s368 = sand.u32 %s97, 1
        %s369 = smul.addr %s368, 32
        %s370 = scalar_lea.vmem [#allocation4], %s369
        // Predicated region
        $region49: #{bloom_forward.1} parent=47 // pred_check
          %p371 = pneg %p110
        $region50: #{bloom_forward.1} parent=47 // pred_check_branch
          %373 = sbr.rel (%p371) target = $region52
        $region51: #{bloom_forward.1} parent=47 // pred_region
          %374 = dma.done %s367, 512
        $region52: #{bloom_forward.1} parent=47 // pred_fallthru
          _
        %s375 = sand.u32 %s30, 1
        %s376 = scalar_lea.sflag [#allocation8], %s375
        %s377 = sand.u32 %s123, 1
        %s378 = smul.addr %s377, 192
        %s379 = scalar_lea.vmem [#allocation7], %s378
        // Predicated region
        $region53: #{bloom_forward.1} parent=47 // pred_check
          %p380 = pneg %p136
        $region54: #{bloom_forward.1} parent=47 // pred_check_branch
          %382 = sbr.rel (%p380) target = $region56
        $region55: #{bloom_forward.1} parent=47 // pred_region
          %383 = dma.done %s376, 3072
        $region56: #{bloom_forward.1} parent=47 // pred_fallthru
          _
        %s384 = sand.u32 %s30, 1
        %s385 = scalar_lea.sflag [#allocation8], %s384
        %s386 = sand.u32 %s175, 1
        %s387 = smul.addr %s386, 256
        %s388 = scalar_lea.vmem [#allocation9], %s387
        // Predicated region
        $region57: #{bloom_forward.1} parent=47 // pred_check
          %p389 = pneg %p188
        $region58: #{bloom_forward.1} parent=47 // pred_check_branch
          %391 = sbr.rel (%p389) target = $region60
        $region59: #{bloom_forward.1} parent=47 // pred_region
          %392 = dma.done %s385, 4096
        $region60: #{bloom_forward.1} parent=47 // pred_fallthru
          _
        %s393 = sand.u32 %s201, 1
        %s394 = scalar_lea.sflag [#allocation11], %s393
        %s395 = sand.u32 %s201, 1
        %s396 = smul.addr %s395, 256
        %s397 = scalar_lea.vmem [#allocation10], %s396
        // Predicated region
        $region61: #{bloom_forward.1} parent=47 // pred_check
          %p398 = pneg %p214
        $region62: #{bloom_forward.1} parent=47 // pred_check_branch
          %400 = sbr.rel (%p398) target = $region64
        $region63: #{bloom_forward.1} parent=47 // pred_region
          %401 = dma.done %s394, 4096
        $region64: #{bloom_forward.1} parent=47 // pred_fallthru
          _
        %p402 = scmp.lt.s32.totalorder %s34, 1
        %s403 = scalar_select %p402, %s34, 1
        %s404 = smul.addr %s403, 8
        %s405 = scalar_lea.vmem %s0, %s404
        %p406 = pneg %p63
        %p407 = pneg %p60
        %p408 = pneg %p84
        %p409 = pneg %p81
        %s410 = sand.u32 %s97, 1
        %s411 = scalar_lea.sflag [#allocation5], %s410
        %s412 = sand.u32 %s97, 1
        %s413 = smul.addr %s412, 32
        %s414 = scalar_lea.vmem [#allocation4], %s413
        %p415 = pneg %p110
        %p416 = pneg %p107
        %s417 = sand.u32 %s30, 1
        %s418 = scalar_lea.sflag [#allocation8], %s417
        %s419 = sand.u32 %s123, 1
        %s420 = smul.addr %s419, 192
        %s421 = scalar_lea.vmem [#allocation7], %s420
        %p422 = pneg %p136
        %p423 = pneg %p133
        %p424 = scmp.lt.s32.totalorder %s35, 1
        %s425 = scalar_select %p424, %s35, 1
        %s426 = smul.addr %s425, 16
        %s427 = smul.addr %s426, 4
        %s428 = scalar_lea.vmem %s4, %s427
        %p429 = pneg %p162
        %p430 = pneg %p159
        %s431 = sand.u32 %s30, 1
        %s432 = scalar_lea.sflag [#allocation8], %s431
        %s433 = sand.u32 %s175, 1
        %s434 = smul.addr %s433, 256
        %s435 = scalar_lea.vmem [#allocation9], %s434
        %p436 = pneg %p188
        %p437 = pneg %p185
        %s438 = sand.u32 %s201, 1
        %s439 = scalar_lea.sflag [#allocation11], %s438
        %s440 = sand.u32 %s201, 1
        %s441 = smul.addr %s440, 256
        %s442 = scalar_lea.vmem [#allocation10], %s441
        %p443 = pneg %p214
        %p444 = pneg %p211
        %p445 = pneg %p240
        %p446 = pneg %p237
        %s447 = sand.u32 %s227, 1
        %s448 = scalar_lea.sflag [#allocation6], %s447
        %s449 = sand.u32 %s227, 1
        %s450 = smul.addr %s449, 8
        %s451 = scalar_lea.vmem [#allocation12], %s450
        %p452 = scmp.lt.s32.totalorder %s34, 1
        %s453 = scalar_select %p452, %s34, 1
        %s454 = smul.addr %s453, 8
        %s455 = scalar_lea.vmem %s0, %s454
        %p456 = scmp.lt.s32.totalorder %s35, 1
        %s457 = scalar_select %p456, %s35, 1
        %s458 = smul.addr %s457, 16
        %s459 = smul.addr %s458, 4
        %s460 = scalar_lea.vmem %s4, %s459
        %p462 = scmp.eq.s32.totalorder %s35, 0
        // Predicated region
        $region65: #{bloom_forward.1} parent=47 // pred_check
          %p463 = pneg %p462
        $region66: #{bloom_forward.1} parent=47 // pred_check_branch
          %465 = sbr.rel (%p463) target = $region68
        $region67: #{bloom_forward.1} parent=47 // pred_region
          %v466 = vld [vmem:[%s455] sm:$0xff]
          %v467 = vld [vmem:[%s1] sm:$0x1]
          %v468 = vld [vmem:[%s1 + $0x1] sm:$0x1]
          %469 = vadd.xlane.f32.xlu0 %v466
          %v470 = vpop.xlane.xlu0 %469
          %v471 = vrcp.pop 128.0
          %v472 = vmul.f32 %v470, %v471
          %v473 = vsub.f32 %v466, %v472
          %v474 = vmul.f32 %v473, %v473
          %475 = vadd.xlane.f32.xlu0 %v474
          %v476 = vpop.xlane.xlu0 %475
          %v477 = vmul.f32 %v476, %v471
          %v478 = vadd.f32 %v477, 1e-05
          %v479 = vrsqrt.pop %v478
          %v480 = vmul.f32 %v473, %v479
          %v481 = vlaneseq
          %v482 = vshrl.u32 %v481, 7
          %v483 = vsub.s32 0, %v482
          %v484 = vrot.slane %v467, %v483
          %v485 = vmul.f32 %v480, %v484
          %v486 = vlaneseq
          %v487 = vshrl.u32 %v486, 7
          %v488 = vsub.s32 0, %v487
          %v489 = vrot.slane %v468, %v488
          %v490 = vadd.f32 %v485, %v489
          %491 = vst [vmem:[%s451] sm:$0xff] %v490
          %v492 = vlaneseq
          %v493 = vshrl.u32 %v492, 7
          %v494 = vlaneseq
          %v495 = vand.u32 %v494, 127
          %vm496 = vcmp.le.s32.totalorder %v495, %v493
          %v497 = vsub.s32 %v495, %v493
          %v498 = vcvt.s32.f32 %v497
          %v499 = vmul.f32 %v498, 0.25
          %v500 = vsel %vm496, %v499, -1e+30
          %vm501 = vcmask 64512
          %502 = vst.msk [vmem:[#allocation3] sm:$0xff] %vm501, %v500
          %v503 = vmul.f32 %v498, 0.0625
          %v504 = vsel %vm496, %v503, -1e+30
          %s505 = scalar_lea.vmem [#allocation3], 8
          %506 = vst.msk [vmem:[%s505] sm:$0xff] %vm501, %v504
          %v507 = vmul.f32 %v498, 0.015625
          %v508 = vsel %vm496, %v507, -1e+30
          %s509 = scalar_lea.vmem [#allocation3], 16
          %510 = vst.msk [vmem:[%s509] sm:$0xff] %vm501, %v508
          %v511 = vmul.f32 %v498, 0.00390625
          %v512 = vsel %vm496, %v511, -1e+30
          %s513 = scalar_lea.vmem [#allocation3], 24
          %514 = vst.msk [vmem:[%s513] sm:$0xff] %vm501, %v512
        $region68: #{bloom_forward.1} parent=47 // pred_fallthru
          _
        %v515 = vld [vmem:[%s451] sm:$0xff]
        %v516 = vld [vmem:[%s370] sm:$0xff]
        %v517 = vld [vmem:[%s370 + $0x8] sm:$0xff]
        %v518 = vld [vmem:[%s370 + $0x10] sm:$0xff]
        %v519 = vld [vmem:[%s370 + $0x18] sm:$0xff]
        %520 = vadd.xlane.f32.xlu0 %v515
        %v521 = vpop.xlane.xlu0 %520
        %v522 = vrcp.pop 128.0
        %v523 = vmul.f32 %v521, %v522
        %v524 = vsub.f32 %v515, %v523
        %v525 = vmul.f32 %v524, %v524
        %526 = vadd.xlane.f32.xlu0 %v525
        %v527 = vpop.xlane.xlu0 %526
        %v528 = vmul.f32 %v527, %v522
        %v529 = vadd.f32 %v528, 1e-05
        %v530 = vrsqrt.pop %v529
        %v531 = vmul.f32 %v524, %v530
        %v532 = vlaneseq
        %v533 = vshrl.u32 %v532, 7
        %v534 = vsub.s32 0, %v533
        %v535 = vrot.slane %v516, %v534
        %v536 = vmul.f32 %v531, %v535
        %v537 = vlaneseq
        %v538 = vshrl.u32 %v537, 7
        %v539 = vsub.s32 1, %v538
        %v540 = vrot.slane %v516, %v539
        %v541 = vadd.f32 %v536, %v540
        %v542 = vpack.c.bf16 %v541, %v541
        %v543 = vld [vmem:[%s379] sm:$0xff]
        %v544 = vld [vmem:[%s379 + $0x8] sm:$0xf]
        %v545 = vld [vmem:[%s379 + $0xc] sm:$0xff]
        %v546 = vld [vmem:[%s379 + $0x14] sm:$0xf]
        %v547 = vld [vmem:[%s379 + $0x18] sm:$0xff]
        %v548 = vld [vmem:[%s379 + $0x20] sm:$0xf]
        %v549 = vld [vmem:[%s379 + $0x24] sm:$0xff]
        %v550 = vld [vmem:[%s379 + $0x2c] sm:$0xf]
        %v551 = vld [vmem:[%s379 + $0x30] sm:$0xff]
        %v552 = vld [vmem:[%s379 + $0x38] sm:$0xf]
        %v553 = vld [vmem:[%s379 + $0x3c] sm:$0xff]
        %v554 = vld [vmem:[%s379 + $0x44] sm:$0xf]
        %v555 = vld [vmem:[%s379 + $0x48] sm:$0xff]
        %v556 = vld [vmem:[%s379 + $0x50] sm:$0xf]
        %v557 = vld [vmem:[%s379 + $0x54] sm:$0xff]
        %v558 = vld [vmem:[%s379 + $0x5c] sm:$0xf]
        %v559 = vld [vmem:[%s379 + $0x60] sm:$0xff]
        %v560 = vld [vmem:[%s379 + $0x68] sm:$0xf]
        %v561 = vld [vmem:[%s379 + $0x6c] sm:$0xff]
        %v562 = vld [vmem:[%s379 + $0x74] sm:$0xf]
        %v563 = vld [vmem:[%s379 + $0x78] sm:$0xff]
        %v564 = vld [vmem:[%s379 + $0x80] sm:$0xf]
        %v565 = vld [vmem:[%s379 + $0x84] sm:$0xff]
        %v566 = vld [vmem:[%s379 + $0x8c] sm:$0xf]
        %v567 = vld [vmem:[%s379 + $0x90] sm:$0xff]
        %v568 = vld [vmem:[%s379 + $0x98] sm:$0xf]
        %v569 = vld [vmem:[%s379 + $0x9c] sm:$0xff]
        %v570 = vld [vmem:[%s379 + $0xa4] sm:$0xf]
        %v571 = vld [vmem:[%s379 + $0xa8] sm:$0xff]
        %v572 = vld [vmem:[%s379 + $0xb0] sm:$0xf]
        %v573 = vld [vmem:[%s379 + $0xb4] sm:$0xff]
        %v574 = vld [vmem:[%s379 + $0xbc] sm:$0xf]
        %v575 = vlaneseq
        %v576 = vshrl.u32 %v575, 7
        %v577 = vsub.s32 4, %v576
        %v578 = vrot.slane %v516, %v577
        %v579 = vlaneseq
        %v580 = vshrl.u32 %v579, 7
        %v581 = vsub.s32 4, %v580
        %v582 = vrot.slane %v517, %v581
        %v583 = vlaneseq
        %v584 = vshrl.u32 %v583, 7
        %v585 = vsub.s32 4, %v584
        %v586 = vrot.slane %v518, %v585
        %v619 = vunpack.c.l.b16 %v543
        %v620 = vunpack.c.h.b16 %v543
        %v621 = vunpack.c.l.b16 %v544
        %v622 = vunpack.c.l.b16 %v545
        %v623 = vunpack.c.h.b16 %v545
        %v624 = vunpack.c.l.b16 %v546
        %v625 = vunpack.c.l.b16 %v547
        %v626 = vunpack.c.h.b16 %v547
        %v627 = vunpack.c.l.b16 %v548
        %v628 = vunpack.c.l.b16 %v549
        %v629 = vunpack.c.h.b16 %v549
        %v630 = vunpack.c.l.b16 %v550
        %v631 = vunpack.c.l.b16 %v551
        %v632 = vunpack.c.h.b16 %v551
        %v633 = vunpack.c.l.b16 %v552
        %v634 = vunpack.c.l.b16 %v553
        %v635 = vunpack.c.h.b16 %v553
        %v636 = vunpack.c.l.b16 %v554
        %v637 = vunpack.c.l.b16 %v555
        %v638 = vunpack.c.h.b16 %v555
        %v639 = vunpack.c.l.b16 %v556
        %v640 = vunpack.c.l.b16 %v557
        %v641 = vunpack.c.h.b16 %v557
        %v642 = vunpack.c.l.b16 %v558
        %v643 = vunpack.c.l.b16 %v559
        %v644 = vunpack.c.h.b16 %v559
        %v645 = vunpack.c.l.b16 %v560
        %v646 = vunpack.c.l.b16 %v561
        %v647 = vunpack.c.h.b16 %v561
        %v648 = vunpack.c.l.b16 %v562
        %v649 = vunpack.c.l.b16 %v563
        %v650 = vunpack.c.h.b16 %v563
        %v651 = vunpack.c.l.b16 %v564
        %v652 = vunpack.c.l.b16 %v565
        %v653 = vunpack.c.h.b16 %v565
        %v654 = vunpack.c.l.b16 %v566
        %v655 = vunpack.c.l.b16 %v567
        %v656 = vunpack.c.h.b16 %v567
        %v657 = vunpack.c.l.b16 %v568
        %v658 = vunpack.c.l.b16 %v569
        %v659 = vunpack.c.h.b16 %v569
        %v660 = vunpack.c.l.b16 %v570
        %v661 = vunpack.c.l.b16 %v571
        %v662 = vunpack.c.h.b16 %v571
        %v663 = vunpack.c.l.b16 %v572
        %v664 = vunpack.c.l.b16 %v573
        %v665 = vunpack.c.h.b16 %v573
        %v666 = vunpack.c.l.b16 %v574
        %v667 = vpack.c.b16 %v622, %v619
        %v668 = vpack.c.b16 %v623, %v620
        %v669 = vpack.c.b16 %v624, %v621
        %v670 = vpack.c.b16 %v628, %v625
        %v671 = vpack.c.b16 %v629, %v626
        %v672 = vpack.c.b16 %v630, %v627
        %v673 = vpack.c.b16 %v634, %v631
        %v674 = vpack.c.b16 %v635, %v632
        %v675 = vpack.c.b16 %v636, %v633
        %v676 = vpack.c.b16 %v640, %v637
        %v677 = vpack.c.b16 %v641, %v638
        %v678 = vpack.c.b16 %v642, %v639
        %v679 = vpack.c.b16 %v646, %v643
        %v680 = vpack.c.b16 %v647, %v644
        %v681 = vpack.c.b16 %v648, %v645
        %v682 = vpack.c.b16 %v652, %v649
        %v683 = vpack.c.b16 %v653, %v650
        %v684 = vpack.c.b16 %v654, %v651
        %v685 = vpack.c.b16 %v658, %v655
        %v686 = vpack.c.b16 %v659, %v656
        %v687 = vpack.c.b16 %v660, %v657
        %v688 = vpack.c.b16 %v664, %v661
        %v689 = vpack.c.b16 %v665, %v662
        %v690 = vpack.c.b16 %v666, %v663
        %715 = vmatprep.subr.bf16.mxu0 %v689
        %716 = vmatpush1.bf16.msra.mxu0 %v688
        %717 = vmatprep.subr.bf16.mxu0 %v686
        %718 = vmatpush1.bf16.msra.mxu0 %v685
        %719 = vmatprep.subr.bf16.mxu0 %v683
        %720 = vmatpush1.bf16.msra.mxu0 %v682
        %721 = vmatprep.subr.bf16.mxu0 %v680
        %722 = vmatpush1.bf16.msra.mxu0 %v679
        %723 = vmatprep.subr.bf16.mxu0 %v677
        %724 = vmatpush1.bf16.msra.mxu0 %v676
        %725 = vmatprep.subr.bf16.mxu0 %v674
        %726 = vmatpush1.bf16.msra.mxu0 %v673
        %727 = vmatprep.subr.bf16.mxu0 %v671
        %728 = vmatpush1.bf16.msra.mxu0 %v670
        %729 = vmatprep.subr.bf16.mxu0 %v668
        %730 = vmatpush1.bf16.msra.mxu0 %v667
        %731 = vmatprep.subr.bf16.mxu0 0
        %732 = vmatpush2.bf16.msra.mxu0 0
        %733 = vmatprep.subr.bf16.mxu0 0
        %734 = vmatpush2.bf16.msra.mxu0 0
        %735 = vmatprep.subr.bf16.mxu0 0
        %736 = vmatpush2.bf16.msra.mxu0 0
        %737 = vmatprep.subr.bf16.mxu0 0
        %738 = vmatpush2.bf16.msra.mxu0 0
        %739 = vmatprep.subr.bf16.mxu0 0
        %740 = vmatpush2.bf16.msra.mxu0 0
        %741 = vmatprep.subr.bf16.mxu0 0
        %742 = vmatpush2.bf16.msra.mxu0 0
        %743 = vmatprep.subr.bf16.mxu0 0
        %744 = vmatpush2.bf16.msra.mxu0 0
        %745 = vmatprep.subr.bf16.mxu0 0
        %746 = vmatpush2.bf16.msra.mxu0 0
        %747 = vmatprep.mubr.bf16.mxu0 0
        %748 = vmatmul.mubr.bf16.gmra.mxu0 %v542
        %v749 = vpop.f32.mrf.mxu0
        %v750 = vadd.f32 %v578, %v749
        %v751 = vpop.f32.mrf.mxu0
        %v752 = vadd.f32 %v582, %v751
        %v753 = vpop.f32.mrf.mxu0
        %v754 = vpop.f32.mrf.mxu0
        %755 = vdwg.mxu0
        %756 = vmatprep.subr.bf16.mxu0 0
        %757 = vmatpush1.bf16.msra.mxu0 %v690
        %758 = vmatprep.subr.bf16.mxu0 0
        %759 = vmatpush1.bf16.msra.mxu0 %v687
        %760 = vmatprep.subr.bf16.mxu0 0
        %761 = vmatpush1.bf16.msra.mxu0 %v684
        %762 = vmatprep.subr.bf16.mxu0 0
        %763 = vmatpush1.bf16.msra.mxu0 %v681
        %764 = vmatprep.subr.bf16.mxu0 0
        %765 = vmatpush1.bf16.msra.mxu0 %v678
        %766 = vmatprep.subr.bf16.mxu0 0
        %767 = vmatpush1.bf16.msra.mxu0 %v675
        %768 = vmatprep.subr.bf16.mxu0 0
        %769 = vmatpush1.bf16.msra.mxu0 %v672
        %770 = vmatprep.subr.bf16.mxu0 0
        %771 = vmatpush1.bf16.msra.mxu0 %v669
        %772 = vmatprep.subr.bf16.mxu0 0
        %773 = vmatpush2.bf16.msra.mxu0 0
        %774 = vmatprep.subr.bf16.mxu0 0
        %775 = vmatpush2.bf16.msra.mxu0 0
        %776 = vmatprep.subr.bf16.mxu0 0
        %777 = vmatpush2.bf16.msra.mxu0 0
        %778 = vmatprep.subr.bf16.mxu0 0
        %779 = vmatpush2.bf16.msra.mxu0 0
        %780 = vmatprep.subr.bf16.mxu0 0
        %781 = vmatpush2.bf16.msra.mxu0 0
        %782 = vmatprep.subr.bf16.mxu0 0
        %783 = vmatpush2.bf16.msra.mxu0 0
        %784 = vmatprep.subr.bf16.mxu0 0
        %785 = vmatpush2.bf16.msra.mxu0 0
        %786 = vmatprep.subr.bf16.mxu0 0
        %787 = vmatpush2.bf16.msra.mxu0 0
        %788 = vmatprep.mubr.bf16.mxu0 0
        %789 = vmatmul.mubr.bf16.gmra.mxu0 %v542
        %v790 = vpop.f32.mrf.mxu0
        %v791 = vadd.f32 %v586, %v790
        %v792 = vpop.f32.mrf.mxu0
        %v793 = vpop.f32.mrf.mxu0
        %v794 = vpop.f32.mrf.mxu0
        %795 = vdwg.mxu0
        %v796 = vpack.c.bf16 %v750, %v750
        %v797 = vpack.c.bf16 %v752, %v752
        %v798 = vpack.c.bf16 %v791, %v791
        %vm799 = vcmask 261120
        %v801 = vsel %vm799, %v796, 0
        %v804 = vsel %vm799, %v797, 0
        %806 = vmatprep.subr.bf16.mxu0 0
        %807 = vmatpush1.bf16.xpose.msra.mxu0 0
        %808 = vmatprep.subr.bf16.mxu0 0
        %809 = vmatpush1.bf16.xpose.msra.mxu0 0
        %810 = vmatprep.subr.bf16.mxu0 0
        %811 = vmatpush1.bf16.xpose.msra.mxu0 0
        %812 = vmatprep.subr.bf16.mxu0 0
        %813 = vmatpush1.bf16.xpose.msra.mxu0 0
        %814 = vmatprep.subr.bf16.mxu0 0
        %815 = vmatpush1.bf16.xpose.msra.mxu0 0
        %816 = vmatprep.subr.bf16.mxu0 0
        %817 = vmatpush1.bf16.xpose.msra.mxu0 0
        %818 = vmatprep.subr.bf16.mxu0 0
        %819 = vmatpush1.bf16.xpose.msra.mxu0 0
        %820 = vmatprep.subr.bf16.mxu0 0
        %821 = vmatpush1.bf16.xpose.msra.mxu0 %v804
        %822 = vmatprep.subr.bf16.mxu0 0
        %823 = vmatpush2.bf16.xpose.msra.mxu0 0
        %824 = vmatprep.subr.bf16.mxu0 0
        %825 = vmatpush2.bf16.xpose.msra.mxu0 0
        %826 = vmatprep.subr.bf16.mxu0 0
        %827 = vmatpush2.bf16.xpose.msra.mxu0 0
        %828 = vmatprep.subr.bf16.mxu0 0
        %829 = vmatpush2.bf16.xpose.msra.mxu0 0
        %830 = vmatprep.subr.bf16.mxu0 0
        %831 = vmatpush2.bf16.xpose.msra.mxu0 0
        %832 = vmatprep.subr.bf16.mxu0 0
        %833 = vmatpush2.bf16.xpose.msra.mxu0 0
        %834 = vmatprep.subr.bf16.mxu0 0
        %835 = vmatpush2.bf16.xpose.msra.mxu0 0
        %836 = vmatprep.subr.bf16.mxu0 0
        %837 = vmatpush2.bf16.xpose.msra.mxu0 0
        %838 = vmatprep.mubr.bf16.mxu0 0
        %839 = vmatmul.mubr.bf16.gmra.mxu0 %v801
        %v840 = vpop.f32.mrf.mxu0
        %v841 = vadd.f32 0.0, %v840
        %v842 = vpop.f32.mrf.mxu0
        %v843 = vpop.f32.mrf.mxu0
        %v844 = vpop.f32.mrf.mxu0
        %845 = vdwg.mxu0
        %v846 = vmul.f32 %v841, 0.17677669
        %v847 = vld [vmem:[#allocation3] sm:$0xff]
        %v848 = vadd.f32 %v846, %v847
        %vm849 = vcmask 64512
        %v850 = vsel %vm849, %v848, -inf
        %851 = vmax.xlane.f32.xlu0 %v850
        %v852 = vpop.xlane.xlu0 %851
        %v853 = vsub.f32 %v848, %v852
        %v854 = vmul.f32 %v853, 1.442695
        %v855 = vpow.pop %v854
        %v856 = vsel %vm849, %v855, 0.0
        %857 = vadd.xlane.f32.xlu0 %v856
        %v858 = vpop.xlane.xlu0 %857
        %v859 = vrcp.pop %v858
        %v860 = vmul.f32 %v855, %v859
        %v861 = vpack.c.bf16 %v860, %v860
        %v863 = vsel %vm849, %v861, 0
        %vm865 = vcmask 1043456
        %v867 = vsel %vm865, %v798, 0
        %869 = vmatprep.subr.bf16.mxu0 0
        %870 = vmatpush1.bf16.msra.mxu0 0
        %871 = vmatprep.subr.bf16.mxu0 0
        %872 = vmatpush1.bf16.msra.mxu0 0
        %873 = vmatprep.subr.bf16.mxu0 0
        %874 = vmatpush1.bf16.msra.mxu0 0
        %875 = vmatprep.subr.bf16.mxu0 0
        %876 = vmatpush1.bf16.msra.mxu0 0
        %877 = vmatprep.subr.bf16.mxu0 0
        %878 = vmatpush1.bf16.msra.mxu0 0
        %879 = vmatprep.subr.bf16.mxu0 0
        %880 = vmatpush1.bf16.msra.mxu0 0
        %881 = vmatprep.subr.bf16.mxu0 0
        %882 = vmatpush1.bf16.msra.mxu0 0
        %883 = vmatprep.subr.bf16.mxu0 0
        %884 = vmatpush1.bf16.msra.mxu0 %v867
        %885 = vmatprep.subr.bf16.mxu0 0
        %886 = vmatpush2.bf16.msra.mxu0 0
        %887 = vmatprep.subr.bf16.mxu0 0
        %888 = vmatpush2.bf16.msra.mxu0 0
        %889 = vmatprep.subr.bf16.mxu0 0
        %890 = vmatpush2.bf16.msra.mxu0 0
        %891 = vmatprep.subr.bf16.mxu0 0
        %892 = vmatpush2.bf16.msra.mxu0 0
        %893 = vmatprep.subr.bf16.mxu0 0
        %894 = vmatpush2.bf16.msra.mxu0 0
        %895 = vmatprep.subr.bf16.mxu0 0
        %896 = vmatpush2.bf16.msra.mxu0 0
        %897 = vmatprep.subr.bf16.mxu0 0
        %898 = vmatpush2.bf16.msra.mxu0 0
        %899 = vmatprep.subr.bf16.mxu0 0
        %900 = vmatpush2.bf16.msra.mxu0 0
        %901 = vmatprep.mubr.bf16.mxu0 0
        %902 = vmatmul.mubr.bf16.gmra.mxu0 %v863
        %v903 = vpop.f32.mrf.mxu0
        %v904 = vadd.f32 0.0, %v903
        %v905 = vpop.f32.mrf.mxu0
        %v906 = vpop.f32.mrf.mxu0
        %v907 = vpop.f32.mrf.mxu0
        %908 = vdwg.mxu0
        %v909 = vpack.c.bf16 %v904, %v904
        %vm910 = vcmask 257024
        %911 = vst.msk [vmem:[#allocation2] sm:$0xf] %vm910, %v909
        %913 = vrot.lane.b32.xlu0 %v796, 96
        %v914 = vpop.permute.xlu0 %913
        %916 = vrot.lane.b32.xlu0 %v797, 96
        %v917 = vpop.permute.xlu0 %916
        %v919 = vsel %vm799, %v914, 0
        %v922 = vsel %vm799, %v917, 0
        %924 = vmatprep.subr.bf16.mxu0 0
        %925 = vmatpush1.bf16.xpose.msra.mxu0 0
        %926 = vmatprep.subr.bf16.mxu0 0
        %927 = vmatpush1.bf16.xpose.msra.mxu0 0
        %928 = vmatprep.subr.bf16.mxu0 0
        %929 = vmatpush1.bf16.xpose.msra.mxu0 0
        %930 = vmatprep.subr.bf16.mxu0 0
        %931 = vmatpush1.bf16.xpose.msra.mxu0 0
        %932 = vmatprep.subr.bf16.mxu0 0
        %933 = vmatpush1.bf16.xpose.msra.mxu0 0
        %934 = vmatprep.subr.bf16.mxu0 0
        %935 = vmatpush1.bf16.xpose.msra.mxu0 0
        %936 = vmatprep.subr.bf16.mxu0 0
        %937 = vmatpush1.bf16.xpose.msra.mxu0 0
        %938 = vmatprep.subr.bf16.mxu0 0
        %939 = vmatpush1.bf16.xpose.msra.mxu0 %v922
        %940 = vmatprep.subr.bf16.mxu0 0
        %941 = vmatpush2.bf16.xpose.msra.mxu0 0
        %942 = vmatprep.subr.bf16.mxu0 0
        %943 = vmatpush2.bf16.xpose.msra.mxu0 0
        %944 = vmatprep.subr.bf16.mxu0 0
        %945 = vmatpush2.bf16.xpose.msra.mxu0 0
        %946 = vmatprep.subr.bf16.mxu0 0
        %947 = vmatpush2.bf16.xpose.msra.mxu0 0
        %948 = vmatprep.subr.bf16.mxu0 0
        %949 = vmatpush2.bf16.xpose.msra.mxu0 0
        %950 = vmatprep.subr.bf16.mxu0 0
        %951 = vmatpush2.bf16.xpose.msra.mxu0 0
        %952 = vmatprep.subr.bf16.mxu0 0
        %953 = vmatpush2.bf16.xpose.msra.mxu0 0
        %954 = vmatprep.subr.bf16.mxu0 0
        %955 = vmatpush2.bf16.xpose.msra.mxu0 0
        %956 = vmatprep.mubr.bf16.mxu0 0
        %957 = vmatmul.mubr.bf16.gmra.mxu0 %v919
        %v958 = vpop.f32.mrf.mxu0
        %v959 = vadd.f32 0.0, %v958
        %v960 = vpop.f32.mrf.mxu0
        %v961 = vpop.f32.mrf.mxu0
        %v962 = vpop.f32.mrf.mxu0
        %963 = vdwg.mxu0
        %v964 = vmul.f32 %v959, 0.17677669
        %s965 = scalar_lea.vmem [#allocation3], 8
        %v966 = vld [vmem:[%s965] sm:$0xff]
        %v967 = vadd.f32 %v964, %v966
        %v968 = vsel %vm849, %v967, -inf
        %969 = vmax.xlane.f32.xlu0 %v968
        %v970 = vpop.xlane.xlu0 %969
        %v971 = vsub.f32 %v967, %v970
        %v972 = vmul.f32 %v971, 1.442695
        %v973 = vpow.pop %v972
        %v974 = vsel %vm849, %v973, 0.0
        %975 = vadd.xlane.f32.xlu0 %v974
        %v976 = vpop.xlane.xlu0 %975
        %v977 = vrcp.pop %v976
        %v978 = vmul.f32 %v973, %v977
        %v979 = vpack.c.bf16 %v978, %v978
        %981 = vrot.lane.b32.xlu0 %v798, 96
        %v982 = vpop.permute.xlu0 %981
        %v984 = vsel %vm849, %v979, 0
        %v987 = vsel %vm865, %v982, 0
        %989 = vmatprep.subr.bf16.mxu0 0
        %990 = vmatpush1.bf16.msra.mxu0 0
        %991 = vmatprep.subr.bf16.mxu0 0
        %992 = vmatpush1.bf16.msra.mxu0 0
        %993 = vmatprep.subr.bf16.mxu0 0
        %994 = vmatpush1.bf16.msra.mxu0 0
        %995 = vmatprep.subr.bf16.mxu0 0
        %996 = vmatpush1.bf16.msra.mxu0 0
        %997 = vmatprep.subr.bf16.mxu0 0
        %998 = vmatpush1.bf16.msra.mxu0 0
        %999 = vmatprep.subr.bf16.mxu0 0
        %1000 = vmatpush1.bf16.msra.mxu0 0
        %1001 = vmatprep.subr.bf16.mxu0 0
        %1002 = vmatpush1.bf16.msra.mxu0 0
        %1003 = vmatprep.subr.bf16.mxu0 0
        %1004 = vmatpush1.bf16.msra.mxu0 %v987
        %1005 = vmatprep.subr.bf16.mxu0 0
        %1006 = vmatpush2.bf16.msra.mxu0 0
        %1007 = vmatprep.subr.bf16.mxu0 0
        %1008 = vmatpush2.bf16.msra.mxu0 0
        %1009 = vmatprep.subr.bf16.mxu0 0
        %1010 = vmatpush2.bf16.msra.mxu0 0
        %1011 = vmatprep.subr.bf16.mxu0 0
        %1012 = vmatpush2.bf16.msra.mxu0 0
        %1013 = vmatprep.subr.bf16.mxu0 0
        %1014 = vmatpush2.bf16.msra.mxu0 0
        %1015 = vmatprep.subr.bf16.mxu0 0
        %1016 = vmatpush2.bf16.msra.mxu0 0
        %1017 = vmatprep.subr.bf16.mxu0 0
        %1018 = vmatpush2.bf16.msra.mxu0 0
        %1019 = vmatprep.subr.bf16.mxu0 0
        %1020 = vmatpush2.bf16.msra.mxu0 0
        %1021 = vmatprep.mubr.bf16.mxu0 0
        %1022 = vmatmul.mubr.bf16.gmra.mxu0 %v984
        %v1023 = vpop.f32.mrf.mxu0
        %v1024 = vadd.f32 0.0, %v1023
        %v1025 = vpop.f32.mrf.mxu0
        %v1026 = vpop.f32.mrf.mxu0
        %v1027 = vpop.f32.mrf.mxu0
        %1028 = vdwg.mxu0
        %v1029 = vpack.c.bf16 %v1024, %v1024
        %v1031 = vunpack.c.l.b16 %v1029
        %v1032 = vpack.c.b16 %v1031, %v1031
        %1033 = vrot.lane.b32.xlu0 %v1032, 32
        %v1034 = vpop.permute.xlu0 %1033
        %vm1036 = vcmask 519424
        %1037 = vst.msk [vmem:[#allocation2] sm:$0xf] %vm1036, %v1034
        %1038 = vrot.lane.b32.xlu0 %v796, 64
        %v1039 = vpop.permute.xlu0 %1038
        %1040 = vrot.lane.b32.xlu0 %v797, 64
        %v1041 = vpop.permute.xlu0 %1040
        %v1043 = vsel %vm799, %v1039, 0
        %v1046 = vsel %vm799, %v1041, 0
        %1048 = vmatprep.subr.bf16.mxu0 0
        %1049 = vmatpush1.bf16.xpose.msra.mxu0 0
        %1050 = vmatprep.subr.bf16.mxu0 0
        %1051 = vmatpush1.bf16.xpose.msra.mxu0 0
        %1052 = vmatprep.subr.bf16.mxu0 0
        %1053 = vmatpush1.bf16.xpose.msra.mxu0 0
        %1054 = vmatprep.subr.bf16.mxu0 0
        %1055 = vmatpush1.bf16.xpose.msra.mxu0 0
        %1056 = vmatprep.subr.bf16.mxu0 0
        %1057 = vmatpush1.bf16.xpose.msra.mxu0 0
        %1058 = vmatprep.subr.bf16.mxu0 0
        %1059 = vmatpush1.bf16.xpose.msra.mxu0 0
        %1060 = vmatprep.subr.bf16.mxu0 0
        %1061 = vmatpush1.bf16.xpose.msra.mxu0 0
        %1062 = vmatprep.subr.bf16.mxu0 0
        %1063 = vmatpush1.bf16.xpose.msra.mxu0 %v1046
        %1064 = vmatprep.subr.bf16.mxu0 0
        %1065 = vmatpush2.bf16.xpose.msra.mxu0 0
        %1066 = vmatprep.subr.bf16.mxu0 0
        %1067 = vmatpush2.bf16.xpose.msra.mxu0 0
        %1068 = vmatprep.subr.bf16.mxu0 0
        %1069 = vmatpush2.bf16.xpose.msra.mxu0 0
        %1070 = vmatprep.subr.bf16.mxu0 0
        %1071 = vmatpush2.bf16.xpose.msra.mxu0 0
        %1072 = vmatprep.subr.bf16.mxu0 0
        %1073 = vmatpush2.bf16.xpose.msra.mxu0 0
        %1074 = vmatprep.subr.bf16.mxu0 0
        %1075 = vmatpush2.bf16.xpose.msra.mxu0 0
        %1076 = vmatprep.subr.bf16.mxu0 0
        %1077 = vmatpush2.bf16.xpose.msra.mxu0 0
        %1078 = vmatprep.subr.bf16.mxu0 0
        %1079 = vmatpush2.bf16.xpose.msra.mxu0 0
        %1080 = vmatprep.mubr.bf16.mxu0 0
        %1081 = vmatmul.mubr.bf16.gmra.mxu0 %v1043
        %v1082 = vpop.f32.mrf.mxu0
        %v1083 = vadd.f32 0.0, %v1082
        %v1084 = vpop.f32.mrf.mxu0
        %v1085 = vpop.f32.mrf.mxu0
        %v1086 = vpop.f32.mrf.mxu0
        %1087 = vdwg.mxu0
        %v1088 = vmul.f32 %v1083, 0.17677669
        %s1089 = scalar_lea.vmem [#allocation3], 16
        %v1090 = vld [vmem:[%s1089] sm:$0xff]
        %v1091 = vadd.f32 %v1088, %v1090
        %v1092 = vsel %vm849, %v1091, -inf
        %1093 = vmax.xlane.f32.xlu0 %v1092
        %v1094 = vpop.xlane.xlu0 %1093
        %v1095 = vsub.f32 %v1091, %v1094
        %v1096 = vmul.f32 %v1095, 1.442695
        %v1097 = vpow.pop %v1096
        %v1098 = vsel %vm849, %v1097, 0.0
        %1099 = vadd.xlane.f32.xlu0 %v1098
        %v1100 = vpop.xlane.xlu0 %1099
        %v1101 = vrcp.pop %v1100
        %v1102 = vmul.f32 %v1097, %v1101
        %v1103 = vpack.c.bf16 %v1102, %v1102
        %1104 = vrot.lane.b32.xlu0 %v798, 64
        %v1105 = vpop.permute.xlu0 %1104
        %v1107 = vsel %vm849, %v1103, 0
        %v1110 = vsel %vm865, %v1105, 0
        %1112 = vmatprep.subr.bf16.mxu0 0
        %1113 = vmatpush1.bf16.msra.mxu0 0
        %1114 = vmatprep.subr.bf16.mxu0 0
        %1115 = vmatpush1.bf16.msra.mxu0 0
        %1116 = vmatprep.subr.bf16.mxu0 0
        %1117 = vmatpush1.bf16.msra.mxu0 0
        %1118 = vmatprep.subr.bf16.mxu0 0
        %1119 = vmatpush1.bf16.msra.mxu0 0
        %1120 = vmatprep.subr.bf16.mxu0 0
        %1121 = vmatpush1.bf16.msra.mxu0 0
        %1122 = vmatprep.subr.bf16.mxu0 0
        %1123 = vmatpush1.bf16.msra.mxu0 0
        %1124 = vmatprep.subr.bf16.mxu0 0
        %1125 = vmatpush1.bf16.msra.mxu0 0
        %1126 = vmatprep.subr.bf16.mxu0 0
        %1127 = vmatpush1.bf16.msra.mxu0 %v1110
        %1128 = vmatprep.subr.bf16.mxu0 0
        %1129 = vmatpush2.bf16.msra.mxu0 0
        %1130 = vmatprep.subr.bf16.mxu0 0
        %1131 = vmatpush2.bf16.msra.mxu0 0
        %1132 = vmatprep.subr.bf16.mxu0 0
        %1133 = vmatpush2.bf16.msra.mxu0 0
        %1134 = vmatprep.subr.bf16.mxu0 0
        %1135 = vmatpush2.bf16.msra.mxu0 0
        %1136 = vmatprep.subr.bf16.mxu0 0
        %1137 = vmatpush2.bf16.msra.mxu0 0
        %1138 = vmatprep.subr.bf16.mxu0 0
        %1139 = vmatpush2.bf16.msra.mxu0 0
        %1140 = vmatprep.subr.bf16.mxu0 0
        %1141 = vmatpush2.bf16.msra.mxu0 0
        %1142 = vmatprep.subr.bf16.mxu0 0
        %1143 = vmatpush2.bf16.msra.mxu0 0
        %1144 = vmatprep.mubr.bf16.mxu0 0
        %1145 = vmatmul.mubr.bf16.gmra.mxu0 %v1107
        %v1146 = vpop.f32.mrf.mxu0
        %v1147 = vadd.f32 0.0, %v1146
        %v1148 = vpop.f32.mrf.mxu0
        %v1149 = vpop.f32.mrf.mxu0
        %v1150 = vpop.f32.mrf.mxu0
        %1151 = vdwg.mxu0
        %v1152 = vpack.c.bf16 %v1147, %v1147
        %v1154 = vunpack.c.l.b16 %v1152
        %v1155 = vpack.c.b16 %v1154, %v1154
        %1156 = vrot.lane.b32.xlu0 %v1155, 64
        %v1157 = vpop.permute.xlu0 %1156
        %vm1159 = vcmask 781824
        %1160 = vst.msk [vmem:[#allocation2] sm:$0xf] %vm1159, %v1157
        %1161 = vrot.lane.b32.xlu0 %v796, 32
        %v1162 = vpop.permute.xlu0 %1161
        %1163 = vrot.lane.b32.xlu0 %v797, 32
        %v1164 = vpop.permute.xlu0 %1163
        %v1166 = vsel %vm799, %v1162, 0
        %v1169 = vsel %vm799, %v1164, 0
        %1171 = vmatprep.subr.bf16.mxu0 0
        %1172 = vmatpush1.bf16.xpose.msra.mxu0 0
        %1173 = vmatprep.subr.bf16.mxu0 0
        %1174 = vmatpush1.bf16.xpose.msra.mxu0 0
        %1175 = vmatprep.subr.bf16.mxu0 0
        %1176 = vmatpush1.bf16.xpose.msra.mxu0 0
        %1177 = vmatprep.subr.bf16.mxu0 0
        %1178 = vmatpush1.bf16.xpose.msra.mxu0 0
        %1179 = vmatprep.subr.bf16.mxu0 0
        %1180 = vmatpush1.bf16.xpose.msra.mxu0 0
        %1181 = vmatprep.subr.bf16.mxu0 0
        %1182 = vmatpush1.bf16.xpose.msra.mxu0 0
        %1183 = vmatprep.subr.bf16.mxu0 0
        %1184 = vmatpush1.bf16.xpose.msra.mxu0 0
        %1185 = vmatprep.subr.bf16.mxu0 0
        %1186 = vmatpush1.bf16.xpose.msra.mxu0 %v1169
        %1187 = vmatprep.subr.bf16.mxu0 0
        %1188 = vmatpush2.bf16.xpose.msra.mxu0 0
        %1189 = vmatprep.subr.bf16.mxu0 0
        %1190 = vmatpush2.bf16.xpose.msra.mxu0 0
        %1191 = vmatprep.subr.bf16.mxu0 0
        %1192 = vmatpush2.bf16.xpose.msra.mxu0 0
        %1193 = vmatprep.subr.bf16.mxu0 0
        %1194 = vmatpush2.bf16.xpose.msra.mxu0 0
        %1195 = vmatprep.subr.bf16.mxu0 0
        %1196 = vmatpush2.bf16.xpose.msra.mxu0 0
        %1197 = vmatprep.subr.bf16.mxu0 0
        %1198 = vmatpush2.bf16.xpose.msra.mxu0 0
        %1199 = vmatprep.subr.bf16.mxu0 0
        %1200 = vmatpush2.bf16.xpose.msra.mxu0 0
        %1201 = vmatprep.subr.bf16.mxu0 0
        %1202 = vmatpush2.bf16.xpose.msra.mxu0 0
        %1203 = vmatprep.mubr.bf16.mxu0 0
        %1204 = vmatmul.mubr.bf16.gmra.mxu0 %v1166
        %v1205 = vpop.f32.mrf.mxu0
        %v1206 = vadd.f32 0.0, %v1205
        %v1207 = vpop.f32.mrf.mxu0
        %v1208 = vpop.f32.mrf.mxu0
        %v1209 = vpop.f32.mrf.mxu0
        %1210 = vdwg.mxu0
        %v1211 = vmul.f32 %v1206, 0.17677669
        %s1212 = scalar_lea.vmem [#allocation3], 24
        %v1213 = vld [vmem:[%s1212] sm:$0xff]
        %v1214 = vadd.f32 %v1211, %v1213
        %v1215 = vsel %vm849, %v1214, -inf
        %1216 = vmax.xlane.f32.xlu0 %v1215
        %v1217 = vpop.xlane.xlu0 %1216
        %v1218 = vsub.f32 %v1214, %v1217
        %v1219 = vmul.f32 %v1218, 1.442695
        %v1220 = vpow.pop %v1219
        %v1221 = vsel %vm849, %v1220, 0.0
        %1222 = vadd.xlane.f32.xlu0 %v1221
        %v1223 = vpop.xlane.xlu0 %1222
        %v1224 = vrcp.pop %v1223
        %v1225 = vmul.f32 %v1220, %v1224
        %v1226 = vpack.c.bf16 %v1225, %v1225
        %1227 = vrot.lane.b32.xlu0 %v798, 32
        %v1228 = vpop.permute.xlu0 %1227
        %v1230 = vsel %vm849, %v1226, 0
        %v1233 = vsel %vm865, %v1228, 0
        %1235 = vmatprep.subr.bf16.mxu0 0
        %1236 = vmatpush1.bf16.msra.mxu0 0
        %1237 = vmatprep.subr.bf16.mxu0 0
        %1238 = vmatpush1.bf16.msra.mxu0 0
        %1239 = vmatprep.subr.bf16.mxu0 0
        %1240 = vmatpush1.bf16.msra.mxu0 0
        %1241 = vmatprep.subr.bf16.mxu0 0
        %1242 = vmatpush1.bf16.msra.mxu0 0
        %1243 = vmatprep.subr.bf16.mxu0 0
        %1244 = vmatpush1.bf16.msra.mxu0 0
        %1245 = vmatprep.subr.bf16.mxu0 0
        %1246 = vmatpush1.bf16.msra.mxu0 0
        %1247 = vmatprep.subr.bf16.mxu0 0
        %1248 = vmatpush1.bf16.msra.mxu0 0
        %1249 = vmatprep.subr.bf16.mxu0 0
        %1250 = vmatpush1.bf16.msra.mxu0 %v1233
        %1251 = vmatprep.subr.bf16.mxu0 0
        %1252 = vmatpush2.bf16.msra.mxu0 0
        %1253 = vmatprep.subr.bf16.mxu0 0
        %1254 = vmatpush2.bf16.msra.mxu0 0
        %1255 = vmatprep.subr.bf16.mxu0 0
        %1256 = vmatpush2.bf16.msra.mxu0 0
        %1257 = vmatprep.subr.bf16.mxu0 0
        %1258 = vmatpush2.bf16.msra.mxu0 0
        %1259 = vmatprep.subr.bf16.mxu0 0
        %1260 = vmatpush2.bf16.msra.mxu0 0
        %1261 = vmatprep.subr.bf16.mxu0 0
        %1262 = vmatpush2.bf16.msra.mxu0 0
        %1263 = vmatprep.subr.bf16.mxu0 0
        %1264 = vmatpush2.bf16.msra.mxu0 0
        %1265 = vmatprep.subr.bf16.mxu0 0
        %1266 = vmatpush2.bf16.msra.mxu0 0
        %1267 = vmatprep.mubr.bf16.mxu0 0
        %1268 = vmatmul.mubr.bf16.gmra.mxu0 %v1230
        %v1269 = vpop.f32.mrf.mxu0
        %v1270 = vadd.f32 0.0, %v1269
        %v1271 = vpop.f32.mrf.mxu0
        %v1272 = vpop.f32.mrf.mxu0
        %v1273 = vpop.f32.mrf.mxu0
        %1274 = vdwg.mxu0
        %v1275 = vpack.c.bf16 %v1270, %v1270
        %v1277 = vunpack.c.l.b16 %v1275
        %v1278 = vpack.c.b16 %v1277, %v1277
        %1279 = vrot.lane.b32.xlu0 %v1278, 96
        %v1280 = vpop.permute.xlu0 %1279
        %vm1282 = vcmask 1044224
        %1283 = vst.msk [vmem:[#allocation2] sm:$0xf] %vm1282, %v1280
        %v1284 = vld [vmem:[#allocation2] sm:$0xf]
        %v1285 = vld [vmem:[%s460] sm:$0xf]
        %v1286 = vld [vmem:[%s460 + $0x4] sm:$0xf]
        %v1287 = vld [vmem:[%s460 + $0x8] sm:$0xf]
        %v1288 = vld [vmem:[%s460 + $0xc] sm:$0xf]
        %v1289 = vld [vmem:[%s460 + $0x10] sm:$0xf]
        %v1290 = vld [vmem:[%s460 + $0x14] sm:$0xf]
        %v1291 = vld [vmem:[%s460 + $0x18] sm:$0xf]
        %v1292 = vld [vmem:[%s460 + $0x1c] sm:$0xf]
        %v1293 = vld [vmem:[%s460 + $0x20] sm:$0xf]
        %v1294 = vld [vmem:[%s460 + $0x24] sm:$0xf]
        %v1295 = vld [vmem:[%s460 + $0x28] sm:$0xf]
        %v1296 = vld [vmem:[%s460 + $0x2c] sm:$0xf]
        %v1297 = vld [vmem:[%s460 + $0x30] sm:$0xf]
        %v1298 = vld [vmem:[%s460 + $0x34] sm:$0xf]
        %v1299 = vld [vmem:[%s460 + $0x38] sm:$0xf]
        %v1300 = vld [vmem:[%s460 + $0x3c] sm:$0xf]
        %v1301 = vlaneseq
        %v1302 = vshrl.u32 %v1301, 7
        %v1303 = vsub.s32 5, %v1302
        %v1304 = vrot.slane %v516, %v1303
        %v1321 = vunpack.c.l.b16 %v1285
        %v1322 = vunpack.c.l.b16 %v1286
        %v1323 = vunpack.c.l.b16 %v1287
        %v1324 = vunpack.c.l.b16 %v1288
        %v1325 = vunpack.c.l.b16 %v1289
        %v1326 = vunpack.c.l.b16 %v1290
        %v1327 = vunpack.c.l.b16 %v1291
        %v1328 = vunpack.c.l.b16 %v1292
        %v1329 = vunpack.c.l.b16 %v1293
        %v1330 = vunpack.c.l.b16 %v1294
        %v1331 = vunpack.c.l.b16 %v1295
        %v1332 = vunpack.c.l.b16 %v1296
        %v1333 = vunpack.c.l.b16 %v1297
        %v1334 = vunpack.c.l.b16 %v1298
        %v1335 = vunpack.c.l.b16 %v1299
        %v1336 = vunpack.c.l.b16 %v1300
        %v1337 = vpack.c.b16 %v1322, %v1321
        %v1338 = vpack.c.b16 %v1324, %v1323
        %v1339 = vpack.c.b16 %v1326, %v1325
        %v1340 = vpack.c.b16 %v1328, %v1327
        %v1341 = vpack.c.b16 %v1330, %v1329
        %v1342 = vpack.c.b16 %v1332, %v1331
        %v1343 = vpack.c.b16 %v1334, %v1333
        %v1344 = vpack.c.b16 %v1336, %v1335
        %1353 = vmatprep.subr.bf16.mxu0 0
        %1354 = vmatpush1.bf16.msra.mxu0 %v1344
        %1355 = vmatprep.subr.bf16.mxu0 0
        %1356 = vmatpush1.bf16.msra.mxu0 %v1343
        %1357 = vmatprep.subr.bf16.mxu0 0
        %1358 = vmatpush1.bf16.msra.mxu0 %v1342
        %1359 = vmatprep.subr.bf16.mxu0 0
        %1360 = vmatpush1.bf16.msra.mxu0 %v1341
        %1361 = vmatprep.subr.bf16.mxu0 0
        %1362 = vmatpush1.bf16.msra.mxu0 %v1340
        %1363 = vmatprep.subr.bf16.mxu0 0
        %1364 = vmatpush1.bf16.msra.mxu0 %v1339
        %1365 = vmatprep.subr.bf16.mxu0 0
        %1366 = vmatpush1.bf16.msra.mxu0 %v1338
        %1367 = vmatprep.subr.bf16.mxu0 0
        %1368 = vmatpush1.bf16.msra.mxu0 %v1337
        %1369 = vmatprep.subr.bf16.mxu0 0
        %1370 = vmatpush2.bf16.msra.mxu0 0
        %1371 = vmatprep.subr.bf16.mxu0 0
        %1372 = vmatpush2.bf16.msra.mxu0 0
        %1373 = vmatprep.subr.bf16.mxu0 0
        %1374 = vmatpush2.bf16.msra.mxu0 0
        %1375 = vmatprep.subr.bf16.mxu0 0
        %1376 = vmatpush2.bf16.msra.mxu0 0
        %1377 = vmatprep.subr.bf16.mxu0 0
        %1378 = vmatpush2.bf16.msra.mxu0 0
        %1379 = vmatprep.subr.bf16.mxu0 0
        %1380 = vmatpush2.bf16.msra.mxu0 0
        %1381 = vmatprep.subr.bf16.mxu0 0
        %1382 = vmatpush2.bf16.msra.mxu0 0
        %1383 = vmatprep.subr.bf16.mxu0 0
        %1384 = vmatpush2.bf16.msra.mxu0 0
        %1385 = vmatprep.mubr.bf16.mxu0 0
        %1386 = vmatmul.mubr.bf16.gmra.mxu0 %v1284
        %v1387 = vpop.f32.mrf.mxu0
        %v1388 = vadd.f32 %v1304, %v1387
        %v1389 = vpop.f32.mrf.mxu0
        %v1390 = vpop.f32.mrf.mxu0
        %v1391 = vpop.f32.mrf.mxu0
        %1392 = vdwg.mxu0
        %v1393 = vadd.f32 %v1388, %v515
        %1394 = vadd.xlane.f32.xlu0 %v1393
        %v1395 = vpop.xlane.xlu0 %1394
        %v1396 = vmul.f32 %v1395, %v522
        %v1397 = vsub.f32 %v1393, %v1396
        %v1398 = vmul.f32 %v1397, %v1397
        %1399 = vadd.xlane.f32.xlu0 %v1398
        %v1400 = vpop.xlane.xlu0 %1399
        %v1401 = vmul.f32 %v1400, %v522
        %v1402 = vadd.f32 %v1401, 1e-05
        %v1403 = vrsqrt.pop %v1402
        %v1404 = vmul.f32 %v1397, %v1403
        %v1405 = vlaneseq
        %v1406 = vshrl.u32 %v1405, 7
        %v1407 = vsub.s32 2, %v1406
        %v1408 = vrot.slane %v516, %v1407
        %v1409 = vmul.f32 %v1404, %v1408
        %v1410 = vlaneseq
        %v1411 = vshrl.u32 %v1410, 7
        %v1412 = vsub.s32 3, %v1411
        %v1413 = vrot.slane %v516, %v1412
        %v1414 = vadd.f32 %v1409, %v1413
        %v1415 = vpack.c.bf16 %v1414, %v1414
        %v1416 = vld [vmem:[%s388] sm:$0xff]
        %v1417 = vld [vmem:[%s388 + $0x8] sm:$0xff]
        %v1418 = vld [vmem:[%s388 + $0x10] sm:$0xff]
        %v1419 = vld [vmem:[%s388 + $0x18] sm:$0xff]
        %v1420 = vld [vmem:[%s388 + $0x20] sm:$0xff]
        %v1421 = vld [vmem:[%s388 + $0x28] sm:$0xff]
        %v1422 = vld [vmem:[%s388 + $0x30] sm:$0xff]
        %v1423 = vld [vmem:[%s388 + $0x38] sm:$0xff]
        %v1424 = vld [vmem:[%s388 + $0x40] sm:$0xff]
        %v1425 = vld [vmem:[%s388 + $0x48] sm:$0xff]
        %v1426 = vld [vmem:[%s388 + $0x50] sm:$0xff]
        %v1427 = vld [vmem:[%s388 + $0x58] sm:$0xff]
        %v1428 = vld [vmem:[%s388 + $0x60] sm:$0xff]
        %v1429 = vld [vmem:[%s388 + $0x68] sm:$0xff]
        %v1430 = vld [vmem:[%s388 + $0x70] sm:$0xff]
        %v1431 = vld [vmem:[%s388 + $0x78] sm:$0xff]
        %v1432 = vld [vmem:[%s388 + $0x80] sm:$0xff]
        %v1433 = vld [vmem:[%s388 + $0x88] sm:$0xff]
        %v1434 = vld [vmem:[%s388 + $0x90] sm:$0xff]
        %v1435 = vld [vmem:[%s388 + $0x98] sm:$0xff]
        %v1436 = vld [vmem:[%s388 + $0xa0] sm:$0xff]
        %v1437 = vld [vmem:[%s388 + $0xa8] sm:$0xff]
        %v1438 = vld [vmem:[%s388 + $0xb0] sm:$0xff]
        %v1439 = vld [vmem:[%s388 + $0xb8] sm:$0xff]
        %v1440 = vld [vmem:[%s388 + $0xc0] sm:$0xff]
        %v1441 = vld [vmem:[%s388 + $0xc8] sm:$0xff]
        %v1442 = vld [vmem:[%s388 + $0xd0] sm:$0xff]
        %v1443 = vld [vmem:[%s388 + $0xd8] sm:$0xff]
        %v1444 = vld [vmem:[%s388 + $0xe0] sm:$0xff]
        %v1445 = vld [vmem:[%s388 + $0xe8] sm:$0xff]
        %v1446 = vld [vmem:[%s388 + $0xf0] sm:$0xff]
        %v1447 = vld [vmem:[%s388 + $0xf8] sm:$0xff]
        %v1448 = vlaneseq
        %v1449 = vshrl.u32 %v1448, 7
        %v1450 = vsub.s32 6, %v1449
        %v1451 = vrot.slane %v516, %v1450
        %v1452 = vlaneseq
        %v1453 = vshrl.u32 %v1452, 7
        %v1454 = vsub.s32 6, %v1453
        %v1455 = vrot.slane %v517, %v1454
        %v1456 = vlaneseq
        %v1457 = vshrl.u32 %v1456, 7
        %v1458 = vsub.s32 6, %v1457
        %v1459 = vrot.slane %v518, %v1458
        %v1460 = vlaneseq
        %v1461 = vshrl.u32 %v1460, 7
        %v1462 = vsub.s32 6, %v1461
        %v1463 = vrot.slane %v519, %v1462
        %v1496 = vunpack.c.l.b16 %v1416
        %v1497 = vunpack.c.h.b16 %v1416
        %v1498 = vunpack.c.l.b16 %v1417
        %v1499 = vunpack.c.h.b16 %v1417
        %v1500 = vunpack.c.l.b16 %v1418
        %v1501 = vunpack.c.h.b16 %v1418
        %v1502 = vunpack.c.l.b16 %v1419
        %v1503 = vunpack.c.h.b16 %v1419
        %v1504 = vunpack.c.l.b16 %v1420
        %v1505 = vunpack.c.h.b16 %v1420
        %v1506 = vunpack.c.l.b16 %v1421
        %v1507 = vunpack.c.h.b16 %v1421
        %v1508 = vunpack.c.l.b16 %v1422
        %v1509 = vunpack.c.h.b16 %v1422
        %v1510 = vunpack.c.l.b16 %v1423
        %v1511 = vunpack.c.h.b16 %v1423
        %v1512 = vunpack.c.l.b16 %v1424
        %v1513 = vunpack.c.h.b16 %v1424
        %v1514 = vunpack.c.l.b16 %v1425
        %v1515 = vunpack.c.h.b16 %v1425
        %v1516 = vunpack.c.l.b16 %v1426
        %v1517 = vunpack.c.h.b16 %v1426
        %v1518 = vunpack.c.l.b16 %v1427
        %v1519 = vunpack.c.h.b16 %v1427
        %v1520 = vunpack.c.l.b16 %v1428
        %v1521 = vunpack.c.h.b16 %v1428
        %v1522 = vunpack.c.l.b16 %v1429
        %v1523 = vunpack.c.h.b16 %v1429
        %v1524 = vunpack.c.l.b16 %v1430
        %v1525 = vunpack.c.h.b16 %v1430
        %v1526 = vunpack.c.l.b16 %v1431
        %v1527 = vunpack.c.h.b16 %v1431
        %v1528 = vunpack.c.l.b16 %v1432
        %v1529 = vunpack.c.h.b16 %v1432
        %v1530 = vunpack.c.l.b16 %v1433
        %v1531 = vunpack.c.h.b16 %v1433
        %v1532 = vunpack.c.l.b16 %v1434
        %v1533 = vunpack.c.h.b16 %v1434
        %v1534 = vunpack.c.l.b16 %v1435
        %v1535 = vunpack.c.h.b16 %v1435
        %v1536 = vunpack.c.l.b16 %v1436
        %v1537 = vunpack.c.h.b16 %v1436
        %v1538 = vunpack.c.l.b16 %v1437
        %v1539 = vunpack.c.h.b16 %v1437
        %v1540 = vunpack.c.l.b16 %v1438
        %v1541 = vunpack.c.h.b16 %v1438
        %v1542 = vunpack.c.l.b16 %v1439
        %v1543 = vunpack.c.h.b16 %v1439
        %v1544 = vunpack.c.l.b16 %v1440
        %v1545 = vunpack.c.h.b16 %v1440
        %v1546 = vunpack.c.l.b16 %v1441
        %v1547 = vunpack.c.h.b16 %v1441
        %v1548 = vunpack.c.l.b16 %v1442
        %v1549 = vunpack.c.h.b16 %v1442
        %v1550 = vunpack.c.l.b16 %v1443
        %v1551 = vunpack.c.h.b16 %v1443
        %v1552 = vunpack.c.l.b16 %v1444
        %v1553 = vunpack.c.h.b16 %v1444
        %v1554 = vunpack.c.l.b16 %v1445
        %v1555 = vunpack.c.h.b16 %v1445
        %v1556 = vunpack.c.l.b16 %v1446
        %v1557 = vunpack.c.h.b16 %v1446
        %v1558 = vunpack.c.l.b16 %v1447
        %v1559 = vunpack.c.h.b16 %v1447
        %v1560 = vpack.c.b16 %v1500, %v1496
        %v1561 = vpack.c.b16 %v1501, %v1497
        %v1562 = vpack.c.b16 %v1502, %v1498
        %v1563 = vpack.c.b16 %v1503, %v1499
        %v1564 = vpack.c.b16 %v1508, %v1504
        %v1565 = vpack.c.b16 %v1509, %v1505
        %v1566 = vpack.c.b16 %v1510, %v1506
        %v1567 = vpack.c.b16 %v1511, %v1507
        %v1568 = vpack.c.b16 %v1516, %v1512
        %v1569 = vpack.c.b16 %v1517, %v1513
        %v1570 = vpack.c.b16 %v1518, %v1514
        %v1571 = vpack.c.b16 %v1519, %v1515
        %v1572 = vpack.c.b16 %v1524, %v1520
        %v1573 = vpack.c.b16 %v1525, %v1521
        %v1574 = vpack.c.b16 %v1526, %v1522
        %v1575 = vpack.c.b16 %v1527, %v1523
        %v1576 = vpack.c.b16 %v1532, %v1528
        %v1577 = vpack.c.b16 %v1533, %v1529
        %v1578 = vpack.c.b16 %v1534, %v1530
        %v1579 = vpack.c.b16 %v1535, %v1531
        %v1580 = vpack.c.b16 %v1540, %v1536
        %v1581 = vpack.c.b16 %v1541, %v1537
        %v1582 = vpack.c.b16 %v1542, %v1538
        %v1583 = vpack.c.b16 %v1543, %v1539
        %v1584 = vpack.c.b16 %v1548, %v1544
        %v1585 = vpack.c.b16 %v1549, %v1545
        %v1586 = vpack.c.b16 %v1550, %v1546
        %v1587 = vpack.c.b16 %v1551, %v1547
        %v1588 = vpack.c.b16 %v1556, %v1552
        %v1589 = vpack.c.b16 %v1557, %v1553
        %v1590 = vpack.c.b16 %v1558, %v1554
        %v1591 = vpack.c.b16 %v1559, %v1555
        %1624 = vmatprep.subr.bf16.mxu0 %v1589
        %1625 = vmatpush1.bf16.msra.mxu0 %v1588
        %1626 = vmatprep.subr.bf16.mxu0 %v1585
        %1627 = vmatpush1.bf16.msra.mxu0 %v1584
        %1628 = vmatprep.subr.bf16.mxu0 %v1581
        %1629 = vmatpush1.bf16.msra.mxu0 %v1580
        %1630 = vmatprep.subr.bf16.mxu0 %v1577
        %1631 = vmatpush1.bf16.msra.mxu0 %v1576
        %1632 = vmatprep.subr.bf16.mxu0 %v1573
        %1633 = vmatpush1.bf16.msra.mxu0 %v1572
        %1634 = vmatprep.subr.bf16.mxu0 %v1569
        %1635 = vmatpush1.bf16.msra.mxu0 %v1568
        %1636 = vmatprep.subr.bf16.mxu0 %v1565
        %1637 = vmatpush1.bf16.msra.mxu0 %v1564
        %1638 = vmatprep.subr.bf16.mxu0 %v1561
        %1639 = vmatpush1.bf16.msra.mxu0 %v1560
        %1640 = vmatprep.subr.bf16.mxu0 0
        %1641 = vmatpush2.bf16.msra.mxu0 0
        %1642 = vmatprep.subr.bf16.mxu0 0
        %1643 = vmatpush2.bf16.msra.mxu0 0
        %1644 = vmatprep.subr.bf16.mxu0 0
        %1645 = vmatpush2.bf16.msra.mxu0 0
        %1646 = vmatprep.subr.bf16.mxu0 0
        %1647 = vmatpush2.bf16.msra.mxu0 0
        %1648 = vmatprep.subr.bf16.mxu0 0
        %1649 = vmatpush2.bf16.msra.mxu0 0
        %1650 = vmatprep.subr.bf16.mxu0 0
        %1651 = vmatpush2.bf16.msra.mxu0 0
        %1652 = vmatprep.subr.bf16.mxu0 0
        %1653 = vmatpush2.bf16.msra.mxu0 0
        %1654 = vmatprep.subr.bf16.mxu0 0
        %1655 = vmatpush2.bf16.msra.mxu0 0
        %1656 = vmatprep.mubr.bf16.mxu0 0
        %1657 = vmatmul.mubr.bf16.gmra.mxu0 %v1415
        %v1658 = vpop.f32.mrf.mxu0
        %v1659 = vadd.f32 %v1451, %v1658
        %v1660 = vpop.f32.mrf.mxu0
        %v1661 = vadd.f32 %v1455, %v1660
        %v1662 = vpop.f32.mrf.mxu0
        %v1663 = vpop.f32.mrf.mxu0
        %1664 = vdwg.mxu0
        %1665 = vmatprep.subr.bf16.mxu0 %v1591
        %1666 = vmatpush1.bf16.msra.mxu0 %v1590
        %1667 = vmatprep.subr.bf16.mxu0 %v1587
        %1668 = vmatpush1.bf16.msra.mxu0 %v1586
        %1669 = vmatprep.subr.bf16.mxu0 %v1583
        %1670 = vmatpush1.bf16.msra.mxu0 %v1582
        %1671 = vmatprep.subr.bf16.mxu0 %v1579
        %1672 = vmatpush1.bf16.msra.mxu0 %v1578
        %1673 = vmatprep.subr.bf16.mxu0 %v1575
        %1674 = vmatpush1.bf16.msra.mxu0 %v1574
        %1675 = vmatprep.subr.bf16.mxu0 %v1571
        %1676 = vmatpush1.bf16.msra.mxu0 %v1570
        %1677 = vmatprep.subr.bf16.mxu0 %v1567
        %1678 = vmatpush1.bf16.msra.mxu0 %v1566
        %1679 = vmatprep.subr.bf16.mxu0 %v1563
        %1680 = vmatpush1.bf16.msra.mxu0 %v1562
        %1681 = vmatprep.subr.bf16.mxu0 0
        %1682 = vmatpush2.bf16.msra.mxu0 0
        %1683 = vmatprep.subr.bf16.mxu0 0
        %1684 = vmatpush2.bf16.msra.mxu0 0
        %1685 = vmatprep.subr.bf16.mxu0 0
        %1686 = vmatpush2.bf16.msra.mxu0 0
        %1687 = vmatprep.subr.bf16.mxu0 0
        %1688 = vmatpush2.bf16.msra.mxu0 0
        %1689 = vmatprep.subr.bf16.mxu0 0
        %1690 = vmatpush2.bf16.msra.mxu0 0
        %1691 = vmatprep.subr.bf16.mxu0 0
        %1692 = vmatpush2.bf16.msra.mxu0 0
        %1693 = vmatprep.subr.bf16.mxu0 0
        %1694 = vmatpush2.bf16.msra.mxu0 0
        %1695 = vmatprep.subr.bf16.mxu0 0
        %1696 = vmatpush2.bf16.msra.mxu0 0
        %1697 = vmatprep.mubr.bf16.mxu0 0
        %1698 = vmatmul.mubr.bf16.gmra.mxu0 %v1415
        %v1699 = vpop.f32.mrf.mxu0
        %v1700 = vadd.f32 %v1459, %v1699
        %v1701 = vpop.f32.mrf.mxu0
        %v1702 = vadd.f32 %v1463, %v1701
        %v1703 = vpop.f32.mrf.mxu0
        %v1704 = vpop.f32.mrf.mxu0
        %1705 = vdwg.mxu0
        %v1706 = vmul.f32 %v1659, 0.5
        %v1707 = vmul.f32 %v1661, 0.5
        %v1708 = vmul.f32 %v1700, 0.5
        %v1709 = vmul.f32 %v1702, 0.5
        %v1710 = vmul.f32 %v1659, 0.044715
        %v1711 = vmul.f32 %v1661, 0.044715
        %v1712 = vmul.f32 %v1700, 0.044715
        %v1713 = vmul.f32 %v1702, 0.044715
        %v1714 = vmul.f32 %v1710, %v1659
        %v1715 = vmul.f32 %v1711, %v1661
        %v1716 = vmul.f32 %v1712, %v1700
        %v1717 = vmul.f32 %v1713, %v1702
        %v1718 = vmul.f32 %v1714, %v1659
        %v1719 = vmul.f32 %v1715, %v1661
        %v1720 = vmul.f32 %v1716, %v1700
        %v1721 = vmul.f32 %v1717, %v1702
        %v1722 = vadd.f32 %v1659, %v1718
        %v1723 = vadd.f32 %v1661, %v1719
        %v1724 = vadd.f32 %v1700, %v1720
        %v1725 = vadd.f32 %v1702, %v1721
        %v1726 = vmul.f32 %v1722, 0.7978846
        %v1727 = vmul.f32 %v1723, 0.7978846
        %v1728 = vmul.f32 %v1724, 0.7978846
        %v1729 = vmul.f32 %v1725, 0.7978846
        %v1730 = vtanh.pop %v1726
        %v1731 = vtanh.pop %v1727
        %v1732 = vtanh.pop %v1728
        %v1733 = vtanh.pop %v1729
        %v1734 = vadd.f32 %v1730, 1.0
        %v1735 = vadd.f32 %v1731, 1.0
        %v1736 = vadd.f32 %v1732, 1.0
        %v1737 = vadd.f32 %v1733, 1.0
        %v1738 = vmul.f32 %v1706, %v1734
        %v1739 = vmul.f32 %v1707, %v1735
        %v1740 = vmul.f32 %v1708, %v1736
        %v1741 = vmul.f32 %v1709, %v1737
        %v1742 = vpack.c.bf16 %v1738, %v1738
        %v1743 = vpack.c.bf16 %v1739, %v1739
        %v1744 = vpack.c.bf16 %v1740, %v1740
        %v1745 = vpack.c.bf16 %v1741, %v1741
        %v1746 = vld [vmem:[%s397] sm:$0xf]
        %v1747 = vld [vmem:[%s397 + $0x4] sm:$0xf]
        %v1748 = vld [vmem:[%s397 + $0x8] sm:$0xf]
        %v1749 = vld [vmem:[%s397 + $0xc] sm:$0xf]
        %v1750 = vld [vmem:[%s397 + $0x10] sm:$0xf]
        %v1751 = vld [vmem:[%s397 + $0x14] sm:$0xf]
        %v1752 = vld [vmem:[%s397 + $0x18] sm:$0xf]
        %v1753 = vld [vmem:[%s397 + $0x1c] sm:$0xf]
        %v1754 = vld [vmem:[%s397 + $0x20] sm:$0xf]
        %v1755 = vld [vmem:[%s397 + $0x24] sm:$0xf]
        %v1756 = vld [vmem:[%s397 + $0x28] sm:$0xf]
        %v1757 = vld [vmem:[%s397 + $0x2c] sm:$0xf]
        %v1758 = vld [vmem:[%s397 + $0x30] sm:$0xf]
        %v1759 = vld [vmem:[%s397 + $0x34] sm:$0xf]
        %v1760 = vld [vmem:[%s397 + $0x38] sm:$0xf]
        %v1761 = vld [vmem:[%s397 + $0x3c] sm:$0xf]
        %v1762 = vld [vmem:[%s397 + $0x40] sm:$0xf]
        %v1763 = vld [vmem:[%s397 + $0x44] sm:$0xf]
        %v1764 = vld [vmem:[%s397 + $0x48] sm:$0xf]
        %v1765 = vld [vmem:[%s397 + $0x4c] sm:$0xf]
        %v1766 = vld [vmem:[%s397 + $0x50] sm:$0xf]
        %v1767 = vld [vmem:[%s397 + $0x54] sm:$0xf]
        %v1768 = vld [vmem:[%s397 + $0x58] sm:$0xf]
        %v1769 = vld [vmem:[%s397 + $0x5c] sm:$0xf]
        %v1770 = vld [vmem:[%s397 + $0x60] sm:$0xf]
        %v1771 = vld [vmem:[%s397 + $0x64] sm:$0xf]
        %v1772 = vld [vmem:[%s397 + $0x68] sm:$0xf]
        %v1773 = vld [vmem:[%s397 + $0x6c] sm:$0xf]
        %v1774 = vld [vmem:[%s397 + $0x70] sm:$0xf]
        %v1775 = vld [vmem:[%s397 + $0x74] sm:$0xf]
        %v1776 = vld [vmem:[%s397 + $0x78] sm:$0xf]
        %v1777 = vld [vmem:[%s397 + $0x7c] sm:$0xf]
        %v1778 = vld [vmem:[%s397 + $0x80] sm:$0xf]
        %v1779 = vld [vmem:[%s397 + $0x84] sm:$0xf]
        %v1780 = vld [vmem:[%s397 + $0x88] sm:$0xf]
        %v1781 = vld [vmem:[%s397 + $0x8c] sm:$0xf]
        %v1782 = vld [vmem:[%s397 + $0x90] sm:$0xf]
        %v1783 = vld [vmem:[%s397 + $0x94] sm:$0xf]
        %v1784 = vld [vmem:[%s397 + $0x98] sm:$0xf]
        %v1785 = vld [vmem:[%s397 + $0x9c] sm:$0xf]
        %v1786 = vld [vmem:[%s397 + $0xa0] sm:$0xf]
        %v1787 = vld [vmem:[%s397 + $0xa4] sm:$0xf]
        %v1788 = vld [vmem:[%s397 + $0xa8] sm:$0xf]
        %v1789 = vld [vmem:[%s397 + $0xac] sm:$0xf]
        %v1790 = vld [vmem:[%s397 + $0xb0] sm:$0xf]
        %v1791 = vld [vmem:[%s397 + $0xb4] sm:$0xf]
        %v1792 = vld [vmem:[%s397 + $0xb8] sm:$0xf]
        %v1793 = vld [vmem:[%s397 + $0xbc] sm:$0xf]
        %v1794 = vld [vmem:[%s397 + $0xc0] sm:$0xf]
        %v1795 = vld [vmem:[%s397 + $0xc4] sm:$0xf]
        %v1796 = vld [vmem:[%s397 + $0xc8] sm:$0xf]
        %v1797 = vld [vmem:[%s397 + $0xcc] sm:$0xf]
        %v1798 = vld [vmem:[%s397 + $0xd0] sm:$0xf]
        %v1799 = vld [vmem:[%s397 + $0xd4] sm:$0xf]
        %v1800 = vld [vmem:[%s397 + $0xd8] sm:$0xf]
        %v1801 = vld [vmem:[%s397 + $0xdc] sm:$0xf]
        %v1802 = vld [vmem:[%s397 + $0xe0] sm:$0xf]
        %v1803 = vld [vmem:[%s397 + $0xe4] sm:$0xf]
        %v1804 = vld [vmem:[%s397 + $0xe8] sm:$0xf]
        %v1805 = vld [vmem:[%s397 + $0xec] sm:$0xf]
        %v1806 = vld [vmem:[%s397 + $0xf0] sm:$0xf]
        %v1807 = vld [vmem:[%s397 + $0xf4] sm:$0xf]
        %v1808 = vld [vmem:[%s397 + $0xf8] sm:$0xf]
        %v1809 = vld [vmem:[%s397 + $0xfc] sm:$0xf]
        %v1810 = vlaneseq
        %v1811 = vshrl.u32 %v1810, 7
        %v1812 = vsub.s32 7, %v1811
        %v1813 = vrot.slane %v516, %v1812
        %v1878 = vunpack.c.l.b16 %v1746
        %v1879 = vunpack.c.l.b16 %v1747
        %v1880 = vunpack.c.l.b16 %v1748
        %v1881 = vunpack.c.l.b16 %v1749
        %v1882 = vunpack.c.l.b16 %v1750
        %v1883 = vunpack.c.l.b16 %v1751
        %v1884 = vunpack.c.l.b16 %v1752
        %v1885 = vunpack.c.l.b16 %v1753
        %v1886 = vunpack.c.l.b16 %v1754
        %v1887 = vunpack.c.l.b16 %v1755
        %v1888 = vunpack.c.l.b16 %v1756
        %v1889 = vunpack.c.l.b16 %v1757
        %v1890 = vunpack.c.l.b16 %v1758
        %v1891 = vunpack.c.l.b16 %v1759
        %v1892 = vunpack.c.l.b16 %v1760
        %v1893 = vunpack.c.l.b16 %v1761
        %v1894 = vunpack.c.l.b16 %v1762
        %v1895 = vunpack.c.l.b16 %v1763
        %v1896 = vunpack.c.l.b16 %v1764
        %v1897 = vunpack.c.l.b16 %v1765
        %v1898 = vunpack.c.l.b16 %v1766
        %v1899 = vunpack.c.l.b16 %v1767
        %v1900 = vunpack.c.l.b16 %v1768
        %v1901 = vunpack.c.l.b16 %v1769
        %v1902 = vunpack.c.l.b16 %v1770
        %v1903 = vunpack.c.l.b16 %v1771
        %v1904 = vunpack.c.l.b16 %v1772
        %v1905 = vunpack.c.l.b16 %v1773
        %v1906 = vunpack.c.l.b16 %v1774
        %v1907 = vunpack.c.l.b16 %v1775
        %v1908 = vunpack.c.l.b16 %v1776
        %v1909 = vunpack.c.l.b16 %v1777
        %v1910 = vunpack.c.l.b16 %v1778
        %v1911 = vunpack.c.l.b16 %v1779
        %v1912 = vunpack.c.l.b16 %v1780
        %v1913 = vunpack.c.l.b16 %v1781
        %v1914 = vunpack.c.l.b16 %v1782
        %v1915 = vunpack.c.l.b16 %v1783
        %v1916 = vunpack.c.l.b16 %v1784
        %v1917 = vunpack.c.l.b16 %v1785
        %v1918 = vunpack.c.l.b16 %v1786
        %v1919 = vunpack.c.l.b16 %v1787
        %v1920 = vunpack.c.l.b16 %v1788
        %v1921 = vunpack.c.l.b16 %v1789
        %v1922 = vunpack.c.l.b16 %v1790
        %v1923 = vunpack.c.l.b16 %v1791
        %v1924 = vunpack.c.l.b16 %v1792
        %v1925 = vunpack.c.l.b16 %v1793
        %v1926 = vunpack.c.l.b16 %v1794
        %v1927 = vunpack.c.l.b16 %v1795
        %v1928 = vunpack.c.l.b16 %v1796
        %v1929 = vunpack.c.l.b16 %v1797
        %v1930 = vunpack.c.l.b16 %v1798
        %v1931 = vunpack.c.l.b16 %v1799
        %v1932 = vunpack.c.l.b16 %v1800
        %v1933 = vunpack.c.l.b16 %v1801
        %v1934 = vunpack.c.l.b16 %v1802
        %v1935 = vunpack.c.l.b16 %v1803
        %v1936 = vunpack.c.l.b16 %v1804
        %v1937 = vunpack.c.l.b16 %v1805
        %v1938 = vunpack.c.l.b16 %v1806
        %v1939 = vunpack.c.l.b16 %v1807
        %v1940 = vunpack.c.l.b16 %v1808
        %v1941 = vunpack.c.l.b16 %v1809
        %v1942 = vpack.c.b16 %v1879, %v1878
        %v1943 = vpack.c.b16 %v1881, %v1880
        %v1944 = vpack.c.b16 %v1883, %v1882
        %v1945 = vpack.c.b16 %v1885, %v1884
        %v1946 = vpack.c.b16 %v1887, %v1886
        %v1947 = vpack.c.b16 %v1889, %v1888
        %v1948 = vpack.c.b16 %v1891, %v1890
        %v1949 = vpack.c.b16 %v1893, %v1892
        %v1950 = vpack.c.b16 %v1895, %v1894
        %v1951 = vpack.c.b16 %v1897, %v1896
        %v1952 = vpack.c.b16 %v1899, %v1898
        %v1953 = vpack.c.b16 %v1901, %v1900
        %v1954 = vpack.c.b16 %v1903, %v1902
        %v1955 = vpack.c.b16 %v1905, %v1904
        %v1956 = vpack.c.b16 %v1907, %v1906
        %v1957 = vpack.c.b16 %v1909, %v1908
        %v1958 = vpack.c.b16 %v1911, %v1910
        %v1959 = vpack.c.b16 %v1913, %v1912
        %v1960 = vpack.c.b16 %v1915, %v1914
        %v1961 = vpack.c.b16 %v1917, %v1916
        %v1962 = vpack.c.b16 %v1919, %v1918
        %v1963 = vpack.c.b16 %v1921, %v1920
        %v1964 = vpack.c.b16 %v1923, %v1922
        %v1965 = vpack.c.b16 %v1925, %v1924
        %v1966 = vpack.c.b16 %v1927, %v1926
        %v1967 = vpack.c.b16 %v1929, %v1928
        %v1968 = vpack.c.b16 %v1931, %v1930
        %v1969 = vpack.c.b16 %v1933, %v1932
        %v1970 = vpack.c.b16 %v1935, %v1934
        %v1971 = vpack.c.b16 %v1937, %v1936
        %v1972 = vpack.c.b16 %v1939, %v1938
        %v1973 = vpack.c.b16 %v1941, %v1940
        %2006 = vmatprep.subr.bf16.mxu0 0
        %2007 = vmatpush1.bf16.msra.mxu0 %v1949
        %2008 = vmatprep.subr.bf16.mxu0 0
        %2009 = vmatpush1.bf16.msra.mxu0 %v1948
        %2010 = vmatprep.subr.bf16.mxu0 0
        %2011 = vmatpush1.bf16.msra.mxu0 %v1947
        %2012 = vmatprep.subr.bf16.mxu0 0
        %2013 = vmatpush1.bf16.msra.mxu0 %v1946
        %2014 = vmatprep.subr.bf16.mxu0 0
        %2015 = vmatpush1.bf16.msra.mxu0 %v1945
        %2016 = vmatprep.subr.bf16.mxu0 0
        %2017 = vmatpush1.bf16.msra.mxu0 %v1944
        %2018 = vmatprep.subr.bf16.mxu0 0
        %2019 = vmatpush1.bf16.msra.mxu0 %v1943
        %2020 = vmatprep.subr.bf16.mxu0 0
        %2021 = vmatpush1.bf16.msra.mxu0 %v1942
        %2022 = vmatprep.subr.bf16.mxu0 0
        %2023 = vmatpush2.bf16.msra.mxu0 %v1957
        %2024 = vmatprep.subr.bf16.mxu0 0
        %2025 = vmatpush2.bf16.msra.mxu0 %v1956
        %2026 = vmatprep.subr.bf16.mxu0 0
        %2027 = vmatpush2.bf16.msra.mxu0 %v1955
        %2028 = vmatprep.subr.bf16.mxu0 0
        %2029 = vmatpush2.bf16.msra.mxu0 %v1954
        %2030 = vmatprep.subr.bf16.mxu0 0
        %2031 = vmatpush2.bf16.msra.mxu0 %v1953
        %2032 = vmatprep.subr.bf16.mxu0 0
        %2033 = vmatpush2.bf16.msra.mxu0 %v1952
        %2034 = vmatprep.subr.bf16.mxu0 0
        %2035 = vmatpush2.bf16.msra.mxu0 %v1951
        %2036 = vmatprep.subr.bf16.mxu0 0
        %2037 = vmatpush2.bf16.msra.mxu0 %v1950
        %2038 = vmatprep.mubr.bf16.mxu0 %v1743
        %2039 = vmatmul.mubr.bf16.gmra.mxu0 %v1742
        %v2040 = vpop.f32.mrf.mxu0
        %v2041 = vadd.f32 %v1813, %v2040
        %v2042 = vpop.f32.mrf.mxu0
        %v2043 = vpop.f32.mrf.mxu0
        %v2044 = vpop.f32.mrf.mxu0
        %2045 = vdwg.mxu0
        %2046 = vmatprep.subr.bf16.mxu0 0
        %2047 = vmatpush1.bf16.msra.mxu0 %v1965
        %2048 = vmatprep.subr.bf16.mxu0 0
        %2049 = vmatpush1.bf16.msra.mxu0 %v1964
        %2050 = vmatprep.subr.bf16.mxu0 0
        %2051 = vmatpush1.bf16.msra.mxu0 %v1963
        %2052 = vmatprep.subr.bf16.mxu0 0
        %2053 = vmatpush1.bf16.msra.mxu0 %v1962
        %2054 = vmatprep.subr.bf16.mxu0 0
        %2055 = vmatpush1.bf16.msra.mxu0 %v1961
        %2056 = vmatprep.subr.bf16.mxu0 0
        %2057 = vmatpush1.bf16.msra.mxu0 %v1960
        %2058 = vmatprep.subr.bf16.mxu0 0
        %2059 = vmatpush1.bf16.msra.mxu0 %v1959
        %2060 = vmatprep.subr.bf16.mxu0 0
        %2061 = vmatpush1.bf16.msra.mxu0 %v1958
        %2062 = vmatprep.subr.bf16.mxu0 0
        %2063 = vmatpush2.bf16.msra.mxu0 %v1973
        %2064 = vmatprep.subr.bf16.mxu0 0
        %2065 = vmatpush2.bf16.msra.mxu0 %v1972
        %2066 = vmatprep.subr.bf16.mxu0 0
        %2067 = vmatpush2.bf16.msra.mxu0 %v1971
        %2068 = vmatprep.subr.bf16.mxu0 0
        %2069 = vmatpush2.bf16.msra.mxu0 %v1970
        %2070 = vmatprep.subr.bf16.mxu0 0
        %2071 = vmatpush2.bf16.msra.mxu0 %v1969
        %2072 = vmatprep.subr.bf16.mxu0 0
        %2073 = vmatpush2.bf16.msra.mxu0 %v1968
        %2074 = vmatprep.subr.bf16.mxu0 0
        %2075 = vmatpush2.bf16.msra.mxu0 %v1967
        %2076 = vmatprep.subr.bf16.mxu0 0
        %2077 = vmatpush2.bf16.msra.mxu0 %v1966
        %2078 = vmatprep.mubr.bf16.mxu0 %v1745
        %2079 = vmatmul.mubr.bf16.gmra.mxu0 %v1744
        %v2080 = vpop.f32.mrf.mxu0
        %v2081 = vadd.f32 %v2041, %v2080
        %v2082 = vpop.f32.mrf.mxu0
        %v2083 = vpop.f32.mrf.mxu0
        %v2084 = vpop.f32.mrf.mxu0
        %2085 = vdwg.mxu0
        %v2086 = vadd.f32 %v2081, %v1393
        %v2087 = vld [vmem:[%s1 + $0x2] sm:$0x1]
        %v2088 = vld [vmem:[%s1 + $0x3] sm:$0x1]
        %2089 = vadd.xlane.f32.xlu0 %v2086
        %v2090 = vpop.xlane.xlu0 %2089
        %v2091 = vmul.f32 %v2090, %v522
        %v2092 = vsub.f32 %v2086, %v2091
        %v2093 = vmul.f32 %v2092, %v2092
        %2094 = vadd.xlane.f32.xlu0 %v2093
        %v2095 = vpop.xlane.xlu0 %2094
        %v2096 = vmul.f32 %v2095, %v522
        %v2097 = vadd.f32 %v2096, 1e-05
        %v2098 = vrsqrt.pop %v2097
        %v2099 = vmul.f32 %v2092, %v2098
        %v2100 = vlaneseq
        %v2101 = vshrl.u32 %v2100, 7
        %v2102 = vsub.s32 0, %v2101
        %v2103 = vrot.slane %v2087, %v2102
        %v2104 = vmul.f32 %v2099, %v2103
        %v2105 = vlaneseq
        %v2106 = vshrl.u32 %v2105, 7
        %v2107 = vsub.s32 0, %v2106
        %v2108 = vrot.slane %v2088, %v2107
        %v2109 = vadd.f32 %v2104, %v2108
        %p2110 = scmp.eq.s32.totalorder %s35, 1
        %s2111 = scalar_select %p2110, 1, 0
        %v2112 = vstv %s2111
        %vm2113 = vcmp.eq.s32.totalorder %v2112, 1
        %v2114 = vsel %vm2113, %v2109, %v2086
        %2115 = vst [vmem:[%s451] sm:$0xff] %v2114
        %s2116 = sand.u32 %s227, 1
        %s2117 = scalar_lea.sflag [#allocation6], %s2116
        %s2118 = sand.u32 %s227, 1
        %s2119 = smul.addr %s2118, 8
        %s2120 = scalar_lea.vmem [#allocation12], %s2119
        // Predicated region
        $region69: #{bloom_forward.1} parent=47 // pred_check
          %p2121 = pneg %p237
        $region70: #{bloom_forward.1} parent=47 // pred_check_branch
          %2123 = sbr.rel (%p2121) target = $region72
        $region71: #{bloom_forward.1} parent=47 // pred_region
          %s2125 = ssub.s32 128, 128
          %2126 = vsyncadd %s2117, %s2125
          %s2127 = smul.addr %s34, 128
          %s2128 = scalar_lea.hbm %s7, %s2127
          %s2130 = sshll.u32 %s2120, 4
          %s2131 = int_to_ptr.vmem [resolvable:$true] %s2130
          %2133 = dma.vmem_to_hbm [thread:$0]  %s2131, 128, %s2128, %s2117
        $region72: #{bloom_forward.1} parent=47 // pred_fallthru
          _
      $region48: #{bloom_forward.1} parent=5 // pred_fallthru
        _
      %p2134 = scmp.le.s32.totalorder 2, %s25
      // Predicated region
      $region73: #{bloom_forward.1} parent=5 // pred_check
        %p2135 = pneg %p2134
      $region74: #{bloom_forward.1} parent=5 // pred_check_branch
        %2137 = sbr.rel (%p2135) target = $region76
      $region75: #{bloom_forward.1} parent=5 // pred_region
        %s2138 = ssub.s32 %s25, 2
        // Predicated region
        $region77: #{bloom_forward.1} parent=75 // pred_check
          %p2139 = pneg %p243
        $region78: #{bloom_forward.1} parent=75 // pred_check_branch
          %2141 = sbr.rel (%p2139) target = $region80
        $region79: #{bloom_forward.1} parent=75 // pred_region
          %s2142 = sand.u32 %s228, 1
          %s2143 = scalar_lea.sflag [#allocation6], %s2142
          %s2144 = sand.u32 %s228, 1
          %s2145 = smul.addr %s2144, 8
          %s2146 = scalar_lea.vmem [#allocation12], %s2145
          %2147 = dma.done %s2143, 128
        $region80: #{bloom_forward.1} parent=75 // pred_fallthru
          _
      $region76: #{bloom_forward.1} parent=5 // pred_fallthru
        _
    $region6: #{bloom_forward.1} parent=1 // loop_footer
      %s29 = sadd.s32 1, %s25
    $region7: #{bloom_forward.1} parent=1 // loop_footer_branch
      %24 = sbr.rel target = $region3
    $region8: #{bloom_forward.1} parent=1 // loop_exit
      _
    %2148 = vsyncpa [#allocation5], 1
    %s2149 = scalar_lea.sflag [#allocation5], 1
    %2150 = vsyncpa %s2149, 1
    %2151 = vsyncpa [#allocation8], 1
    %s2152 = scalar_lea.sflag [#allocation8], 1
    %2153 = vsyncpa %s2152, 1
    %2154 = vsyncpa [#allocation11], 1
    %s2155 = scalar_lea.sflag [#allocation11], 1
    %2156 = vsyncpa %s2155, 1
    %2157 = vsyncpa [#allocation6], 1
    %s2158 = scalar_lea.sflag [#allocation6], 1
    %2159 = vsyncpa %s2158, 1

</llo_original>
